<compile_context>
chip_gen: v7x
topology: tpu7x:2x2x1
jax: 0.10.0
libtpu: 0.0.40
codegen_flags: <defaults>
</compile_context>

<pallas_src>
import jax
import jax.numpy as jnp
from jax.experimental import pallas as pl
from jax.experimental.pallas import tpu as pltpu


def _round_up(x: int, m: int) -> int:
    return ((x + m - 1) // m) * m


def ffnn_kernel(idx_ref, emb_ref, w1_ref, b1_ref, w2_ref, b2_ref, w3_ref, b3_ref,
                out_ref):
    b_tile, n_tok = idx_ref.shape
    v_pad = emb_ref.shape[0]

    # Fused embeddings(): one-hot token counts over the vocab, then
    # counts @ table on the MXU == gather each token's embedding row and sum
    # over the tweet. Tokens with a negative index (padding / OOV) match no
    # vocab lane and contribute nothing, mirroring the reference's
    # "skip tokens not in word_to_idx".
    idx = idx_ref[...]                                                   # (b_tile, T) i32
    vocab = jax.lax.broadcasted_iota(jnp.int32, (b_tile, v_pad), 1)
    counts = jnp.zeros((b_tile, v_pad), jnp.float32)
    for t in range(n_tok):                                               # static unroll, T small
        counts = counts + (vocab == idx[:, t:t + 1]).astype(jnp.float32)
    x = jnp.dot(counts, emb_ref[...], preferred_element_type=jnp.float32)  # (b_tile, D_pad) f32

    # hidden_layer + sigmoid (bf16 MXU inputs, f32 accumulation / activation)
    h1 = jnp.dot(x.astype(jnp.bfloat16), w1_ref[...],
                 preferred_element_type=jnp.float32) + b1_ref[...]
    h1 = jax.nn.sigmoid(h1)                                              # (b_tile, H_pad) f32

    # hidden_layer2 + sigmoid
    h2 = jnp.dot(h1.astype(jnp.bfloat16), w2_ref[...],
                 preferred_element_type=jnp.float32) + b2_ref[...]
    h2 = jax.nn.sigmoid(h2)                                              # (b_tile, H_pad) f32

    # output_layer + log_softmax. Padded class lanes carry -1e30 baked into b3
    # (their w3 columns are exactly zero), so exp() underflows to 0 and the
    # softmax normalizes over the real classes only — no in-kernel mask needed.
    logits = jnp.dot(h2.astype(jnp.bfloat16), w3_ref[...],
                     preferred_element_type=jnp.float32) + b3_ref[...]   # (b_tile, C_pad)
    m = jnp.max(logits, axis=-1, keepdims=True)
    s = logits - m
    lse = jnp.log(jnp.sum(jnp.exp(s), axis=-1, keepdims=True))
    out_ref[...] = (s - lse).astype(out_ref.dtype)


def ffnn_forward(token_indices, pretrained_embeds, w1, b1, w2, b2, w3, b3,
                 *, b_tile=None):
    """Batched forward pass of the FFNN module.

    token_indices:      (B, T) int token ids per tweet; negative entries are
                        ignored (padding / out-of-vocab tokens).
    pretrained_embeds:  (V, D) f32 embedding table.
    Weights in PyTorch nn.Linear layout: w1 (H, D), b1 (H,), w2 (H, H),
    b2 (H,), w3 (C, H), b3 (C,).
    Returns (B, C) f32 log-probabilities (row b == module output for tweet b).
    """
    V, D = pretrained_embeds.shape
    H = w1.shape[0]
    C = w3.shape[0]
    B, T = token_indices.shape

    V_pad = _round_up(V, 128)    # lane dim of the one-hot counts matmul
    D_pad = _round_up(D, 128)
    H_pad = _round_up(H, 128)    # 300 -> 384
    C_pad = _round_up(C, 128)    # 3   -> 128 (lane-dense output store)

    if b_tile is None:
        target = _round_up(max(B, 1), 8)
        if target >= 1024:
            b_tile = 512                                  # ~85% HBM roofline per tiling sweep
        elif target >= 16:
            b_tile = _round_up((target + 1) // 2, 8)      # >=2 grid steps -> both v7x TCs busy
        else:
            b_tile = 8
    assert b_tile % 8 == 0, "b_tile must be a multiple of 8 (sublane tiling)"
    B_pad = _round_up(B, b_tile)

    # Token indices: padded batch rows get -1 (match no vocab row -> zero
    # embedding sum). This replaces the old padded f32 x stream entirely.
    idx_p = jnp.full((B_pad, T), -1, jnp.int32).at[:B, :].set(
        token_indices.astype(jnp.int32))

    # Embedding table resident in VMEM (zero-padded rows are never selected).
    # TODO(synk): for large vocabularies the table will not fit VMEM; switch to
    # a manual DMA row-gather (memory_space=pl.ANY + pltpu.make_async_copy).
    emb_p = jnp.zeros((V_pad, D_pad), jnp.float32).at[:V, :D].set(
        pretrained_embeds.astype(jnp.float32))

    # Weights pre-transposed to [in, out], bf16 (MXU-native); biases f32.
    # Zero padding is exact: padded hidden lanes give sigmoid(0)=0.5 but
    # multiply zero weight rows of the next layer.
    w1_p = jnp.zeros((D_pad, H_pad), jnp.bfloat16).at[:D, :H].set(w1.T.astype(jnp.bfloat16))
    b1_p = jnp.zeros((1, H_pad), jnp.float32).at[0, :H].set(b1)
    w2_p = jnp.zeros((H_pad, H_pad), jnp.bfloat16).at[:H, :H].set(w2.T.astype(jnp.bfloat16))
    b2_p = jnp.zeros((1, H_pad), jnp.float32).at[0, :H].set(b2)
    w3_p = jnp.zeros((H_pad, C_pad), jnp.bfloat16).at[:H, :C].set(w3.T.astype(jnp.bfloat16))
    # Class-padding mask baked into the bias (padded w3 columns are exactly 0,
    # so padded logits equal -1e30 and vanish in the softmax).
    b3_p = jnp.full((1, C_pad), -1e30, jnp.float32).at[0, :C].set(b3)

    out = pl.pallas_call(
        ffnn_kernel,
        out_shape=jax.ShapeDtypeStruct((B_pad, C_pad), jnp.bfloat16),
        grid=(B_pad // b_tile,),
        in_specs=[
            # per-tile token indices (streams over the batch grid; last dim
            # equals the full array dim, so the <128-lane block is legal)
            pl.BlockSpec((b_tile, T), lambda b: (b, 0)),
            # table / weights / biases: constant block index -> VMEM-resident
            pl.BlockSpec((V_pad, D_pad), lambda b: (0, 0)),
            pl.BlockSpec((D_pad, H_pad), lambda b: (0, 0)),
            pl.BlockSpec((1, H_pad), lambda b: (0, 0)),
            pl.BlockSpec((H_pad, H_pad), lambda b: (0, 0)),
            pl.BlockSpec((1, H_pad), lambda b: (0, 0)),
            pl.BlockSpec((H_pad, C_pad), lambda b: (0, 0)),
            pl.BlockSpec((1, C_pad), lambda b: (0, 0)),
        ],
        out_specs=pl.BlockSpec((b_tile, C_pad), lambda b: (b, 0)),
        compiler_params=pltpu.CompilerParams(
            dimension_semantics=("parallel",),
            vmem_limit_bytes=64 * 1024 * 1024),
    )(idx_p, emb_p, w1_p, b1_p, w2_p, b2_p, w3_p, b3_p)

    return out[:B, :C].astype(jnp.float32)


def ffnn_reference(token_indices, pretrained_embeds, w1, b1, w2, b2, w3, b3):
    """Pure-JAX reference with the same bf16 matmul inputs / f32 math."""
    x = jnp.take(pretrained_embeds, token_indices, axis=0).sum(axis=1).astype(jnp.float32)
    h1 = jax.nn.sigmoid(
        jnp.dot(x.astype(jnp.bfloat16), w1.T.astype(jnp.bfloat16),
                preferred_element_type=jnp.float32) + b1[None, :])
    h2 = jax.nn.sigmoid(
        jnp.dot(h1.astype(jnp.bfloat16), w2.T.astype(jnp.bfloat16),
                preferred_element_type=jnp.float32) + b2[None, :])
    logits = jnp.dot(h2.astype(jnp.bfloat16), w3.T.astype(jnp.bfloat16),
                     preferred_element_type=jnp.float32) + b3[None, :]
    return jax.nn.log_softmax(logits, axis=-1)


if __name__ == "__main__":
    # Small, deterministic synthetic setup consistent with the module.
    key = jax.random.PRNGKey(0)
    k_emb, k_idx, k1, kb1, k2, kb2, k3, kb3 = jax.random.split(key, 8)

    num_embeddings = 64      # vocab size
    embeddings_dim = 32      # embedding dim
    hidden_neurons = 300     # hard-coded in FFNN.__init__
    n_classes = 3            # e.g. positive / neutral / negative
    n_tokens = 8             # tokens per tweet
    batch = 16               # number of tweets processed per call

    pretrained_embeds = jax.random.normal(
        k_emb, (num_embeddings, embeddings_dim), jnp.float32)
    token_indices = jax.random.randint(
        k_idx, (batch, n_tokens), 0, num_embeddings, dtype=jnp.int32)

    # Deterministic nn.Linear-style parameters in PyTorch [out, in] layout.
    def linear_params(kw, kb, fan_in, fan_out):
        bound = 1.0 / jnp.sqrt(fan_in)
        w = jax.random.uniform(kw, (fan_out, fan_in), jnp.float32, -bound, bound)
        b = jax.random.uniform(kb, (fan_out,), jnp.float32, -bound, bound)
        return w, b

    w1, b1 = linear_params(k1, kb1, embeddings_dim, hidden_neurons)
    w2, b2 = linear_params(k2, kb2, hidden_neurons, hidden_neurons)
    w3, b3 = linear_params(k3, kb3, hidden_neurons, n_classes)

    # Default b_tile selection gives a 2-step parallel grid for this batch.
    out = ffnn_forward(token_indices, pretrained_embeds,
                       w1, b1, w2, b2, w3, b3)
    out = jax.block_until_ready(out)
    assert out.shape == (batch, n_classes)

    ref = jax.block_until_ready(
        ffnn_reference(token_indices, pretrained_embeds, w1, b1, w2, b2, w3, b3))
    max_err = float(jnp.max(jnp.abs(out - ref)))
    assert max_err < 2e-2, f"kernel/reference mismatch: max_err={max_err}"
    # rows sum to 1 in probability space (bf16 output store -> looser bound)
    assert float(jnp.max(jnp.abs(jnp.sum(jnp.exp(out), axis=-1) - 1.0))) < 1e-2

    print("KERNEL_OK")
</pallas_src>

<mosaic_0001>
module attributes {stable_mosaic.version = 11 : i64} {
  func.func @ffnn_kernel(%arg0: i32, %arg1: memref<8x8xi32, #tpu.memory_space<vmem>>, %arg2: memref<128x128xf32, #tpu.memory_space<vmem>>, %arg3: memref<128x384xbf16, #tpu.memory_space<vmem>>, %arg4: memref<1x384xf32, #tpu.memory_space<vmem>>, %arg5: memref<384x384xbf16, #tpu.memory_space<vmem>>, %arg6: memref<1x384xf32, #tpu.memory_space<vmem>>, %arg7: memref<384x128xbf16, #tpu.memory_space<vmem>>, %arg8: memref<1x128xf32, #tpu.memory_space<vmem>>, %arg9: memref<8x128xbf16, #tpu.memory_space<vmem>>) attributes {dimension_semantics = [#tpu.dimension_semantics<parallel>], iteration_bounds = array<i64: 2>, scalar_prefetch = 0 : i64, scratch_operands = 0 : i64, tpu.core_type = #tpu.core_type<tc>, window_params = [{transform_indices = @transform_0, window_bounds = array<i64: 8, 8>}, {pipeline_mode = #tpu.pipeline_mode<synchronous>, transform_indices = @transform_1, window_bounds = array<i64: 128, 128>}, {pipeline_mode = #tpu.pipeline_mode<synchronous>, transform_indices = @transform_2, window_bounds = array<i64: 128, 384>}, {pipeline_mode = #tpu.pipeline_mode<synchronous>, transform_indices = @transform_3, window_bounds = array<i64: 1, 384>}, {pipeline_mode = #tpu.pipeline_mode<synchronous>, transform_indices = @transform_4, window_bounds = array<i64: 384, 384>}, {pipeline_mode = #tpu.pipeline_mode<synchronous>, transform_indices = @transform_5, window_bounds = array<i64: 1, 384>}, {pipeline_mode = #tpu.pipeline_mode<synchronous>, transform_indices = @transform_6, window_bounds = array<i64: 384, 128>}, {pipeline_mode = #tpu.pipeline_mode<synchronous>, transform_indices = @transform_7, window_bounds = array<i64: 1, 128>}, {transform_indices = @transform_8, window_bounds = array<i64: 8, 128>}]} {
    %c0 = arith.constant 0 : index
    %c0_0 = arith.constant 0 : index
    %0 = vector.load %arg1[%c0, %c0_0] : memref<8x8xi32, #tpu.memory_space<vmem>>, vector<8x8xi32>
    %1 = tpu.iota {dimensions = array<i32: 1>} : vector<8x128xi32>
    %cst = arith.constant 0.000000e+00 : f32
    %2 = vector.broadcast %cst : f32 to vector<8x128xf32>
    %3 = vector.extract_strided_slice %0 {offsets = [0, 0], sizes = [8, 1], strides = [1, 1]} : vector<8x8xi32> to vector<8x1xi32>
    %4 = vector.broadcast %3 : vector<8x1xi32> to vector<8x128xi32>
    %5 = arith.cmpi eq, %1, %4 : vector<8x128xi32>
    %6 = arith.extui %5 : vector<8x128xi1> to vector<8x128xi32>
    %7 = arith.sitofp %6 : vector<8x128xi32> to vector<8x128xf32>
    %8 = arith.addf %2, %7 : vector<8x128xf32>
    %9 = vector.extract_strided_slice %0 {offsets = [0, 1], sizes = [8, 1], strides = [1, 1]} : vector<8x8xi32> to vector<8x1xi32>
    %10 = vector.broadcast %9 : vector<8x1xi32> to vector<8x128xi32>
    %11 = arith.cmpi eq, %1, %10 : vector<8x128xi32>
    %12 = arith.extui %11 : vector<8x128xi1> to vector<8x128xi32>
    %13 = arith.sitofp %12 : vector<8x128xi32> to vector<8x128xf32>
    %14 = arith.addf %8, %13 : vector<8x128xf32>
    %15 = vector.extract_strided_slice %0 {offsets = [0, 2], sizes = [8, 1], strides = [1, 1]} : vector<8x8xi32> to vector<8x1xi32>
    %16 = vector.broadcast %15 : vector<8x1xi32> to vector<8x128xi32>
    %17 = arith.cmpi eq, %1, %16 : vector<8x128xi32>
    %18 = arith.extui %17 : vector<8x128xi1> to vector<8x128xi32>
    %19 = arith.sitofp %18 : vector<8x128xi32> to vector<8x128xf32>
    %20 = arith.addf %14, %19 : vector<8x128xf32>
    %21 = vector.extract_strided_slice %0 {offsets = [0, 3], sizes = [8, 1], strides = [1, 1]} : vector<8x8xi32> to vector<8x1xi32>
    %22 = vector.broadcast %21 : vector<8x1xi32> to vector<8x128xi32>
    %23 = arith.cmpi eq, %1, %22 : vector<8x128xi32>
    %24 = arith.extui %23 : vector<8x128xi1> to vector<8x128xi32>
    %25 = arith.sitofp %24 : vector<8x128xi32> to vector<8x128xf32>
    %26 = arith.addf %20, %25 : vector<8x128xf32>
    %27 = vector.extract_strided_slice %0 {offsets = [0, 4], sizes = [8, 1], strides = [1, 1]} : vector<8x8xi32> to vector<8x1xi32>
    %28 = vector.broadcast %27 : vector<8x1xi32> to vector<8x128xi32>
    %29 = arith.cmpi eq, %1, %28 : vector<8x128xi32>
    %30 = arith.extui %29 : vector<8x128xi1> to vector<8x128xi32>
    %31 = arith.sitofp %30 : vector<8x128xi32> to vector<8x128xf32>
    %32 = arith.addf %26, %31 : vector<8x128xf32>
    %33 = vector.extract_strided_slice %0 {offsets = [0, 5], sizes = [8, 1], strides = [1, 1]} : vector<8x8xi32> to vector<8x1xi32>
    %34 = vector.broadcast %33 : vector<8x1xi32> to vector<8x128xi32>
    %35 = arith.cmpi eq, %1, %34 : vector<8x128xi32>
    %36 = arith.extui %35 : vector<8x128xi1> to vector<8x128xi32>
    %37 = arith.sitofp %36 : vector<8x128xi32> to vector<8x128xf32>
    %38 = arith.addf %32, %37 : vector<8x128xf32>
    %39 = vector.extract_strided_slice %0 {offsets = [0, 6], sizes = [8, 1], strides = [1, 1]} : vector<8x8xi32> to vector<8x1xi32>
    %40 = vector.broadcast %39 : vector<8x1xi32> to vector<8x128xi32>
    %41 = arith.cmpi eq, %1, %40 : vector<8x128xi32>
    %42 = arith.extui %41 : vector<8x128xi1> to vector<8x128xi32>
    %43 = arith.sitofp %42 : vector<8x128xi32> to vector<8x128xf32>
    %44 = arith.addf %38, %43 : vector<8x128xf32>
    %45 = vector.extract_strided_slice %0 {offsets = [0, 7], sizes = [8, 1], strides = [1, 1]} : vector<8x8xi32> to vector<8x1xi32>
    %46 = vector.broadcast %45 : vector<8x1xi32> to vector<8x128xi32>
    %47 = arith.cmpi eq, %1, %46 : vector<8x128xi32>
    %48 = arith.extui %47 : vector<8x128xi1> to vector<8x128xi32>
    %49 = arith.sitofp %48 : vector<8x128xi32> to vector<8x128xf32>
    %50 = arith.addf %44, %49 : vector<8x128xf32>
    %c0_1 = arith.constant 0 : index
    %c0_2 = arith.constant 0 : index
    %51 = vector.load %arg2[%c0_1, %c0_2] : memref<128x128xf32, #tpu.memory_space<vmem>>, vector<128x128xf32>
    %cst_3 = arith.constant dense<0.000000e+00> : vector<8x128xf32>
    %52 = tpu.matmul %50, %51, %cst_3 {dimension_numbers = #tpu.dot_dimension_numbers<[1], [0], [0], [1], [0, 0, 1, 1], [], []>} : vector<8x128xf32>, vector<128x128xf32>, vector<8x128xf32> -> vector<8x128xf32>
    %53 = arith.truncf %52 : vector<8x128xf32> to vector<8x128xbf16>
    %c0_4 = arith.constant 0 : index
    %c0_5 = arith.constant 0 : index
    %54 = vector.load %arg3[%c0_4, %c0_5] : memref<128x384xbf16, #tpu.memory_space<vmem>>, vector<128x384xbf16>
    %cst_6 = arith.constant dense<0.000000e+00> : vector<8x384xf32>
    %55 = tpu.matmul %53, %54, %cst_6 {dimension_numbers = #tpu.dot_dimension_numbers<[1], [0], [0], [1], [0, 0, 1, 1], [], []>} : vector<8x128xbf16>, vector<128x384xbf16>, vector<8x384xf32> -> vector<8x384xf32>
    %c0_7 = arith.constant 0 : index
    %c0_8 = arith.constant 0 : index
    %56 = vector.load %arg4[%c0_7, %c0_8] : memref<1x384xf32, #tpu.memory_space<vmem>>, vector<1x384xf32>
    %57 = vector.broadcast %56 : vector<1x384xf32> to vector<8x384xf32>
    %58 = arith.addf %55, %57 : vector<8x384xf32>
    %59 = arith.negf %58 : vector<8x384xf32>
    %60 = math.exp %59 : vector<8x384xf32>
    %cst_9 = arith.constant 1.000000e+00 : f32
    %61 = vector.broadcast %cst_9 : f32 to vector<8x384xf32>
    %62 = arith.addf %61, %60 : vector<8x384xf32>
    %63 = arith.divf %61, %62 : vector<8x384xf32>
    %64 = arith.truncf %63 : vector<8x384xf32> to vector<8x384xbf16>
    %c0_10 = arith.constant 0 : index
    %c0_11 = arith.constant 0 : index
    %65 = vector.load %arg5[%c0_10, %c0_11] : memref<384x384xbf16, #tpu.memory_space<vmem>>, vector<384x384xbf16>
    %cst_12 = arith.constant dense<0.000000e+00> : vector<8x384xf32>
    %66 = tpu.matmul %64, %65, %cst_12 {dimension_numbers = #tpu.dot_dimension_numbers<[1], [0], [0], [1], [0, 0, 1, 1], [], []>} : vector<8x384xbf16>, vector<384x384xbf16>, vector<8x384xf32> -> vector<8x384xf32>
    %c0_13 = arith.constant 0 : index
    %c0_14 = arith.constant 0 : index
    %67 = vector.load %arg6[%c0_13, %c0_14] : memref<1x384xf32, #tpu.memory_space<vmem>>, vector<1x384xf32>
    %68 = vector.broadcast %67 : vector<1x384xf32> to vector<8x384xf32>
    %69 = arith.addf %66, %68 : vector<8x384xf32>
    %70 = arith.negf %69 : vector<8x384xf32>
    %71 = math.exp %70 : vector<8x384xf32>
    %cst_15 = arith.constant 1.000000e+00 : f32
    %72 = vector.broadcast %cst_15 : f32 to vector<8x384xf32>
    %73 = arith.addf %72, %71 : vector<8x384xf32>
    %74 = arith.divf %72, %73 : vector<8x384xf32>
    %75 = arith.truncf %74 : vector<8x384xf32> to vector<8x384xbf16>
    %c0_16 = arith.constant 0 : index
    %c0_17 = arith.constant 0 : index
    %76 = vector.load %arg7[%c0_16, %c0_17] : memref<384x128xbf16, #tpu.memory_space<vmem>>, vector<384x128xbf16>
    %cst_18 = arith.constant dense<0.000000e+00> : vector<8x128xf32>
    %77 = tpu.matmul %75, %76, %cst_18 {dimension_numbers = #tpu.dot_dimension_numbers<[1], [0], [0], [1], [0, 0, 1, 1], [], []>} : vector<8x384xbf16>, vector<384x128xbf16>, vector<8x128xf32> -> vector<8x128xf32>
    %c0_19 = arith.constant 0 : index
    %c0_20 = arith.constant 0 : index
    %78 = vector.load %arg8[%c0_19, %c0_20] : memref<1x128xf32, #tpu.memory_space<vmem>>, vector<1x128xf32>
    %79 = vector.broadcast %78 : vector<1x128xf32> to vector<8x128xf32>
    %80 = arith.addf %77, %79 : vector<8x128xf32>
    %cst_21 = arith.constant dense<0xFF800000> : vector<8xf32>
    %81 = vector.multi_reduction <maximumf>, %80, %cst_21 [1] : vector<8x128xf32> to vector<8xf32>
    %82 = vector.shape_cast %81 : vector<8xf32> to vector<8x1xf32>
    %83 = vector.broadcast %82 : vector<8x1xf32> to vector<8x128xf32>
    %84 = arith.subf %80, %83 : vector<8x128xf32>
    %85 = math.exp %84 : vector<8x128xf32>
    %cst_22 = arith.constant dense<0.000000e+00> : vector<8xf32>
    %86 = vector.multi_reduction <add>, %85, %cst_22 [1] : vector<8x128xf32> to vector<8xf32>
    %87 = vector.shape_cast %86 : vector<8xf32> to vector<8x1xf32>
    %88 = math.log %87 : vector<8x1xf32>
    %89 = vector.broadcast %88 : vector<8x1xf32> to vector<8x128xf32>
    %90 = arith.subf %84, %89 : vector<8x128xf32>
    %91 = arith.truncf %90 : vector<8x128xf32> to vector<8x128xbf16>
    %c0_23 = arith.constant 0 : index
    %c0_24 = arith.constant 0 : index
    %92 = vector.load %arg9[%c0_23, %c0_24] : memref<8x128xbf16, #tpu.memory_space<vmem>>, vector<8x128xbf16>
    tpu.vector_store %arg9[%c0_23, %c0_24], %91 {strides = array<i32>} : memref<8x128xbf16, #tpu.memory_space<vmem>>, vector<8x128xbf16>,
    return
  }
  func.func @transform_0(%arg0: i32) -> (i32, i32) {
    %c0_i32 = arith.constant 0 : i32
    %c0_i32_0 = arith.constant 0 : i32
    return %arg0, %c0_i32 : i32, i32
  }
  func.func @transform_1(%arg0: i32) -> (i32, i32) {
    %c0_i32 = arith.constant 0 : i32
    %c0_i32_0 = arith.constant 0 : i32
    %c0_i32_1 = arith.constant 0 : i32
    return %c0_i32, %c0_i32_0 : i32, i32
  }
  func.func @transform_2(%arg0: i32) -> (i32, i32) {
    %c0_i32 = arith.constant 0 : i32
    %c0_i32_0 = arith.constant 0 : i32
    %c0_i32_1 = arith.constant 0 : i32
    return %c0_i32, %c0_i32_0 : i32, i32
  }
  func.func @transform_3(%arg0: i32) -> (i32, i32) {
    %c0_i32 = arith.constant 0 : i32
    %c0_i32_0 = arith.constant 0 : i32
    %c0_i32_1 = arith.constant 0 : i32
    return %c0_i32, %c0_i32_0 : i32, i32
  }
  func.func @transform_4(%arg0: i32) -> (i32, i32) {
    %c0_i32 = arith.constant 0 : i32
    %c0_i32_0 = arith.constant 0 : i32
    %c0_i32_1 = arith.constant 0 : i32
    return %c0_i32, %c0_i32_0 : i32, i32
  }
  func.func @transform_5(%arg0: i32) -> (i32, i32) {
    %c0_i32 = arith.constant 0 : i32
    %c0_i32_0 = arith.constant 0 : i32
    %c0_i32_1 = arith.constant 0 : i32
    return %c0_i32, %c0_i32_0 : i32, i32
  }
  func.func @transform_6(%arg0: i32) -> (i32, i32) {
    %c0_i32 = arith.constant 0 : i32
    %c0_i32_0 = arith.constant 0 : i32
    %c0_i32_1 = arith.constant 0 : i32
    return %c0_i32, %c0_i32_0 : i32, i32
  }
  func.func @transform_7(%arg0: i32) -> (i32, i32) {
    %c0_i32 = arith.constant 0 : i32
    %c0_i32_0 = arith.constant 0 : i32
    %c0_i32_1 = arith.constant 0 : i32
    return %c0_i32, %c0_i32_0 : i32, i32
  }
  func.func @transform_8(%arg0: i32) -> (i32, i32) {
    %c0_i32 = arith.constant 0 : i32
    %c0_i32_0 = arith.constant 0 : i32
    return %arg0, %c0_i32 : i32, i32
  }
}

</mosaic_0001>

<llo_original>
// kernel: tpu_custom_call.1
$region0: #{tpu_custom_call.1}
  #allocation0 [shape = 'u32[]', space=smem, size = 0x4, offset = 0x4, fixed_abs, tag = 'smem constant byte address 0x4 - core index']
  #allocation1 [shape = 'u32[144,128]{1,0:T(1,128)}', space=vmem, size = 0x12000, scoped, tag = 'internal scratch']
  %s0 = inlined_call_operand.hbm [shape: s32[16,8], index: 0, kind: input, shape index: {}]
  %s1 = inlined_call_operand.hbm [shape: f32[128,128], index: 1, kind: input, shape index: {}]
  %s2 = inlined_call_operand.hbm [shape: bf16[128,384], index: 2, kind: input, shape index: {}]
  %s3 = inlined_call_operand.hbm [shape: f32[1,384], index: 3, kind: input, shape index: {}]
  %s4 = inlined_call_operand.hbm [shape: bf16[384,384], index: 4, kind: input, shape index: {}]
  %s5 = inlined_call_operand.hbm [shape: f32[1,384], index: 5, kind: input, shape index: {}]
  %s6 = inlined_call_operand.hbm [shape: bf16[384,128], index: 6, kind: input, shape index: {}]
  %s7 = inlined_call_operand.hbm [shape: f32[1,128], index: 7, kind: input, shape index: {}]
  %s8 = inlined_call_operand.hbm [shape: bf16[16,128], index: 8, kind: output, shape index: {}]
  %s9 = sld [smem:[#allocation0]]
  $region97: #{tpu_custom_call.1} parent=0
    _
  %s11 = ssub.s32 1, %s9
  %s12 = scalar_select 0, %s11, %s9
  $region1: #{tpu_custom_call.1} parent=0
    #allocation2 [shape = 'u8[8192]{0}', space=vmem, size = 0x2000, scoped, tag = 'input window, operand 0']
    #allocation3 [shape = 's32[2]{0}', space=sflag, size = 0x8, scoped, tag = 'scoped memory for tpu_custom_call.1']
    #allocation4 [shape = 's32[2]{0}', space=sflag, size = 0x8, scoped, tag = 'scoped memory for tpu_custom_call.1']
    #allocation5 [shape = 'u8[65536]{0}', space=vmem, size = 0x10000, scoped, tag = 'input window, operand 1, single buffered']
    #allocation6 [shape = 's32[1]{0}', space=sflag, size = 0x4, scoped, tag = 'scoped memory for tpu_custom_call.1']
    #allocation7 [shape = 'u8[98304]{0}', space=vmem, size = 0x18000, scoped, tag = 'input window, operand 2, single buffered']
    #allocation8 [shape = 'u8[1536]{0}', space=vmem, size = 0x800, scoped, tag = 'input window, operand 3, single buffered']
    #allocation9 [shape = 's32[1]{0}', space=sflag, size = 0x4, scoped, tag = 'scoped memory for tpu_custom_call.1']
    #allocation10 [shape = 'u8[294912]{0}', space=vmem, size = 0x48000, scoped, tag = 'input window, operand 4, single buffered']
    #allocation11 [shape = 'u8[1536]{0}', space=vmem, size = 0x800, scoped, tag = 'input window, operand 5, single buffered']
    #allocation12 [shape = 's32[1]{0}', space=sflag, size = 0x4, scoped, tag = 'scoped memory for tpu_custom_call.1']
    #allocation13 [shape = 'u8[98304]{0}', space=vmem, size = 0x18000, scoped, tag = 'input window, operand 6, single buffered']
    #allocation14 [shape = 'u8[512]{0}', space=vmem, size = 0x400, scoped, tag = 'input window, operand 7, single buffered']
    #allocation15 [shape = 's32[1]{0}', space=sflag, size = 0x4, scoped, tag = 'scoped memory for tpu_custom_call.1']
    #allocation16 [shape = 'u8[4096]{0}', space=vmem, size = 0x1000, scoped, tag = 'output window, operand 0']
    %13 = vsyncpa [#allocation3], 0
    %s14 = scalar_lea.sflag [#allocation3], 1
    %15 = vsyncpa %s14, 0
    %16 = vsyncpa [#allocation6], 0
    %17 = vsyncpa [#allocation9], 0
    %18 = vsyncpa [#allocation12], 0
    %19 = vsyncpa [#allocation15], 0
    %20 = vsyncpa [#allocation4], 0
    %s21 = scalar_lea.sflag [#allocation4], 1
    %22 = vsyncpa %s21, 0
    loop: start=0, step=1, limit=4
    $region2: #{tpu_custom_call.1} parent=1 // loop_pre_header
      _
    $region3: #{tpu_custom_call.1} parent=1 // loop_header
      %s24 = sphi 0, %s28
      %p25 = scmp.ge.s32.totalorder %s24, 4
      %s34 = sphi 0, %s36
      %s37 = sphi 0, %s34
      %s38 = sphi 0, %s37
      %s54 = sphi 0, %s38
      %s58 = sphi 0, %s58
      %s60 = sphi 0, %s58
      %s61 = sphi 0, %s60
      %s75 = sphi 0, %s61
      %s79 = sphi 0, %s79
      %s81 = sphi 0, %s79
      %s82 = sphi 0, %s81
      %s96 = sphi 0, %s82
      %s100 = sphi 0, %s100
      %s102 = sphi 0, %s100
      %s103 = sphi 0, %s102
      %s117 = sphi 0, %s103
      %s121 = sphi 0, %s121
      %s123 = sphi 0, %s121
      %s124 = sphi 0, %s123
      %s138 = sphi 0, %s124
      %s142 = sphi 0, %s142
      %s144 = sphi 0, %s142
      %s145 = sphi 0, %s144
      %s159 = sphi 0, %s145
      %s163 = sphi 0, %s163
      %s165 = sphi 0, %s163
      %s166 = sphi 0, %s165
      %s180 = sphi 0, %s166
      %s184 = sphi 0, %s184
      %s186 = sphi 0, %s184
      %s187 = sphi 0, %s186
      %s201 = sphi 0, %s187
      %s207 = sphi 0, %s209
      %s210 = sphi 0, %s207
      %s211 = sphi 0, %s210
      %s227 = sphi 0, %s211
    $region4: #{tpu_custom_call.1} parent=1 // loop_header_branch
      %27 = sbr.rel (%p25) target = $region8
    $region5: #{tpu_custom_call.1} parent=1 // loop_body
      %s29 = ssub.s32 %s24, 1
      %s30 = ssub.s32 %s24, 2
      %s31 = sadd.s32 %s24, 1
      %s32 = ssub.s32 %s24, %s31
      %p33 = scmp.eq.s32.totalorder %s32, 0
      %s35 = sadd.s32 %s34, 1
      %s36 = scalar_select %p33, %s34, %s35
      %p39 = pneg %p33
      %p40 = scmp.eq.s32.totalorder %s24, 1
      %p41 = por %p39, %p40
      %p42 = scmp.ne.s32.totalorder %s34, %s37
      %p43 = scmp.eq.s32.totalorder %s24, 0
      %p44 = por %p42, %p43
      %p45 = scmp.ne.s32.totalorder %s34, %s37
      %p46 = scmp.eq.s32.totalorder %s29, 1
      %p47 = por %p45, %p46
      %p48 = scmp.ne.s32.totalorder %s37, %s38
      %p49 = scmp.eq.s32.totalorder %s29, 0
      %p50 = por %p48, %p49
      %p51 = scmp.ne.s32.totalorder %s37, %s38
      %p52 = scmp.eq.s32.totalorder %s30, 1
      %p53 = por %p51, %p52
      %p55 = scmp.ne.s32.totalorder %s38, %s54
      %p56 = scmp.eq.s32.totalorder %s30, 0
      %p57 = por %p55, %p56
      %s59 = sadd.s32 %s58, 1
      %p62 = scmp.eq.s32.totalorder %s24, 1
      %p63 = scmp.ne.s32.totalorder %s58, %s60
      %p64 = scmp.eq.s32.totalorder %s24, 0
      %p65 = por %p63, %p64
      %p66 = scmp.ne.s32.totalorder %s58, %s60
      %p67 = scmp.eq.s32.totalorder %s29, 1
      %p68 = por %p66, %p67
      %p69 = scmp.ne.s32.totalorder %s60, %s61
      %p70 = scmp.eq.s32.totalorder %s29, 0
      %p71 = por %p69, %p70
      %p72 = scmp.ne.s32.totalorder %s60, %s61
      %p73 = scmp.eq.s32.totalorder %s30, 1
      %p74 = por %p72, %p73
      %p76 = scmp.ne.s32.totalorder %s61, %s75
      %p77 = scmp.eq.s32.totalorder %s30, 0
      %p78 = por %p76, %p77
      %s80 = sadd.s32 %s79, 1
      %p83 = scmp.eq.s32.totalorder %s24, 1
      %p84 = scmp.ne.s32.totalorder %s79, %s81
      %p85 = scmp.eq.s32.totalorder %s24, 0
      %p86 = por %p84, %p85
      %p87 = scmp.ne.s32.totalorder %s79, %s81
      %p88 = scmp.eq.s32.totalorder %s29, 1
      %p89 = por %p87, %p88
      %p90 = scmp.ne.s32.totalorder %s81, %s82
      %p91 = scmp.eq.s32.totalorder %s29, 0
      %p92 = por %p90, %p91
      %p93 = scmp.ne.s32.totalorder %s81, %s82
      %p94 = scmp.eq.s32.totalorder %s30, 1
      %p95 = por %p93, %p94
      %p97 = scmp.ne.s32.totalorder %s82, %s96
      %p98 = scmp.eq.s32.totalorder %s30, 0
      %p99 = por %p97, %p98
      %s101 = sadd.s32 %s100, 1
      %p104 = scmp.eq.s32.totalorder %s24, 1
      %p105 = scmp.ne.s32.totalorder %s100, %s102
      %p106 = scmp.eq.s32.totalorder %s24, 0
      %p107 = por %p105, %p106
      %p108 = scmp.ne.s32.totalorder %s100, %s102
      %p109 = scmp.eq.s32.totalorder %s29, 1
      %p110 = por %p108, %p109
      %p111 = scmp.ne.s32.totalorder %s102, %s103
      %p112 = scmp.eq.s32.totalorder %s29, 0
      %p113 = por %p111, %p112
      %p114 = scmp.ne.s32.totalorder %s102, %s103
      %p115 = scmp.eq.s32.totalorder %s30, 1
      %p116 = por %p114, %p115
      %p118 = scmp.ne.s32.totalorder %s103, %s117
      %p119 = scmp.eq.s32.totalorder %s30, 0
      %p120 = por %p118, %p119
      %s122 = sadd.s32 %s121, 1
      %p125 = scmp.eq.s32.totalorder %s24, 1
      %p126 = scmp.ne.s32.totalorder %s121, %s123
      %p127 = scmp.eq.s32.totalorder %s24, 0
      %p128 = por %p126, %p127
      %p129 = scmp.ne.s32.totalorder %s121, %s123
      %p130 = scmp.eq.s32.totalorder %s29, 1
      %p131 = por %p129, %p130
      %p132 = scmp.ne.s32.totalorder %s123, %s124
      %p133 = scmp.eq.s32.totalorder %s29, 0
      %p134 = por %p132, %p133
      %p135 = scmp.ne.s32.totalorder %s123, %s124
      %p136 = scmp.eq.s32.totalorder %s30, 1
      %p137 = por %p135, %p136
      %p139 = scmp.ne.s32.totalorder %s124, %s138
      %p140 = scmp.eq.s32.totalorder %s30, 0
      %p141 = por %p139, %p140
      %s143 = sadd.s32 %s142, 1
      %p146 = scmp.eq.s32.totalorder %s24, 1
      %p147 = scmp.ne.s32.totalorder %s142, %s144
      %p148 = scmp.eq.s32.totalorder %s24, 0
      %p149 = por %p147, %p148
      %p150 = scmp.ne.s32.totalorder %s142, %s144
      %p151 = scmp.eq.s32.totalorder %s29, 1
      %p152 = por %p150, %p151
      %p153 = scmp.ne.s32.totalorder %s144, %s145
      %p154 = scmp.eq.s32.totalorder %s29, 0
      %p155 = por %p153, %p154
      %p156 = scmp.ne.s32.totalorder %s144, %s145
      %p157 = scmp.eq.s32.totalorder %s30, 1
      %p158 = por %p156, %p157
      %p160 = scmp.ne.s32.totalorder %s145, %s159
      %p161 = scmp.eq.s32.totalorder %s30, 0
      %p162 = por %p160, %p161
      %s164 = sadd.s32 %s163, 1
      %p167 = scmp.eq.s32.totalorder %s24, 1
      %p168 = scmp.ne.s32.totalorder %s163, %s165
      %p169 = scmp.eq.s32.totalorder %s24, 0
      %p170 = por %p168, %p169
      %p171 = scmp.ne.s32.totalorder %s163, %s165
      %p172 = scmp.eq.s32.totalorder %s29, 1
      %p173 = por %p171, %p172
      %p174 = scmp.ne.s32.totalorder %s165, %s166
      %p175 = scmp.eq.s32.totalorder %s29, 0
      %p176 = por %p174, %p175
      %p177 = scmp.ne.s32.totalorder %s165, %s166
      %p178 = scmp.eq.s32.totalorder %s30, 1
      %p179 = por %p177, %p178
      %p181 = scmp.ne.s32.totalorder %s166, %s180
      %p182 = scmp.eq.s32.totalorder %s30, 0
      %p183 = por %p181, %p182
      %s185 = sadd.s32 %s184, 1
      %p188 = scmp.eq.s32.totalorder %s24, 1
      %p189 = scmp.ne.s32.totalorder %s184, %s186
      %p190 = scmp.eq.s32.totalorder %s24, 0
      %p191 = por %p189, %p190
      %p192 = scmp.ne.s32.totalorder %s184, %s186
      %p193 = scmp.eq.s32.totalorder %s29, 1
      %p194 = por %p192, %p193
      %p195 = scmp.ne.s32.totalorder %s186, %s187
      %p196 = scmp.eq.s32.totalorder %s29, 0
      %p197 = por %p195, %p196
      %p198 = scmp.ne.s32.totalorder %s186, %s187
      %p199 = scmp.eq.s32.totalorder %s30, 1
      %p200 = por %p198, %p199
      %p202 = scmp.ne.s32.totalorder %s187, %s201
      %p203 = scmp.eq.s32.totalorder %s30, 0
      %p204 = por %p202, %p203
      %s205 = ssub.s32 %s24, %s31
      %p206 = scmp.eq.s32.totalorder %s205, 0
      %s208 = sadd.s32 %s207, 1
      %s209 = scalar_select %p206, %s207, %s208
      %p212 = pneg %p206
      %p213 = scmp.eq.s32.totalorder %s24, 1
      %p214 = por %p212, %p213
      %p215 = scmp.ne.s32.totalorder %s207, %s210
      %p216 = scmp.eq.s32.totalorder %s24, 0
      %p217 = por %p215, %p216
      %p218 = scmp.ne.s32.totalorder %s207, %s210
      %p219 = scmp.eq.s32.totalorder %s29, 1
      %p220 = por %p218, %p219
      %p221 = scmp.ne.s32.totalorder %s210, %s211
      %p222 = scmp.eq.s32.totalorder %s29, 0
      %p223 = por %p221, %p222
      %p224 = scmp.ne.s32.totalorder %s210, %s211
      %p225 = scmp.eq.s32.totalorder %s30, 1
      %p226 = por %p224, %p225
      %p228 = scmp.ne.s32.totalorder %s211, %s227
      %p229 = scmp.eq.s32.totalorder %s30, 0
      %p230 = por %p228, %p229
      %p231 = scmp.le.s32.totalorder 1, %s24
      %p232 = scmp.lt.s32.totalorder %s24, 3
      %p233 = pnand %p231, %p232
      %p234 = pneg %p233
      // Predicated region
      $region9: #{tpu_custom_call.1} parent=5 // pred_check
        _
      $region10: #{tpu_custom_call.1} parent=5 // pred_check_branch
        %236 = sbr.rel (%p233) target = $region12
      $region11: #{tpu_custom_call.1} parent=5 // pred_region
        %s237 = ssub.s32 %s24, 1
        // Predicated region
        $region13: #{tpu_custom_call.1} parent=11 // pred_check
          %p238 = pneg %p71
        $region14: #{tpu_custom_call.1} parent=11 // pred_check_branch
          %240 = sbr.rel (%p238) target = $region16
        $region15: #{tpu_custom_call.1} parent=11 // pred_region
          %s242 = ssub.s32 2048, 2048
          %243 = vsyncadd [#allocation6], %s242
          %s244 = sshll.u32 [#allocation5], 4
          %s245 = int_to_ptr.vmem [resolvable:$true] %s244
          %250 = dma.hbm_to_vmem [thread:$0]  %s1, 2048, %s245, [#allocation6], 128, 128, 8
        $region16: #{tpu_custom_call.1} parent=11 // pred_fallthru
          _
        // Predicated region
        $region17: #{tpu_custom_call.1} parent=11 // pred_check
          %p251 = pneg %p92
        $region18: #{tpu_custom_call.1} parent=11 // pred_check_branch
          %253 = sbr.rel (%p251) target = $region20
        $region19: #{tpu_custom_call.1} parent=11 // pred_region
          %s255 = ssub.s32 3072, 3072
          %256 = vsyncadd [#allocation6], %s255
          %s257 = sshll.u32 [#allocation7], 4
          %s258 = int_to_ptr.vmem [resolvable:$true] %s257
          %263 = dma.hbm_to_vmem [thread:$0]  %s2, 3072, %s258, [#allocation6], 192, 192, 12
        $region20: #{tpu_custom_call.1} parent=11 // pred_fallthru
          _
        // Predicated region
        $region21: #{tpu_custom_call.1} parent=11 // pred_check
          %p264 = pneg %p113
        $region22: #{tpu_custom_call.1} parent=11 // pred_check_branch
          %266 = sbr.rel (%p264) target = $region24
        $region23: #{tpu_custom_call.1} parent=11 // pred_region
          %s268 = ssub.s32 48, 48
          %269 = vsyncadd [#allocation9], %s268
          %s271 = sshll.u32 [#allocation8], 4
          %s272 = int_to_ptr.vmem [resolvable:$true] %s271
          %274 = dma.hbm_to_vmem [thread:$0]  %s3, 48, %s272, [#allocation9]
        $region24: #{tpu_custom_call.1} parent=11 // pred_fallthru
          _
        // Predicated region
        $region25: #{tpu_custom_call.1} parent=11 // pred_check
          %p275 = pneg %p134
        $region26: #{tpu_custom_call.1} parent=11 // pred_check_branch
          %277 = sbr.rel (%p275) target = $region28
        $region27: #{tpu_custom_call.1} parent=11 // pred_region
          %s279 = ssub.s32 9216, 9216
          %280 = vsyncadd [#allocation9], %s279
          %s281 = sshll.u32 [#allocation10], 4
          %s282 = int_to_ptr.vmem [resolvable:$true] %s281
          %287 = dma.hbm_to_vmem [thread:$0]  %s4, 9216, %s282, [#allocation9], 192, 192, 12
        $region28: #{tpu_custom_call.1} parent=11 // pred_fallthru
          _
        // Predicated region
        $region29: #{tpu_custom_call.1} parent=11 // pred_check
          %p288 = pneg %p155
        $region30: #{tpu_custom_call.1} parent=11 // pred_check_branch
          %290 = sbr.rel (%p288) target = $region32
        $region31: #{tpu_custom_call.1} parent=11 // pred_region
          %s292 = ssub.s32 48, 48
          %293 = vsyncadd [#allocation12], %s292
          %s295 = sshll.u32 [#allocation11], 4
          %s296 = int_to_ptr.vmem [resolvable:$true] %s295
          %298 = dma.hbm_to_vmem [thread:$0]  %s5, 48, %s296, [#allocation12]
        $region32: #{tpu_custom_call.1} parent=11 // pred_fallthru
          _
        // Predicated region
        $region33: #{tpu_custom_call.1} parent=11 // pred_check
          %p299 = pneg %p176
        $region34: #{tpu_custom_call.1} parent=11 // pred_check_branch
          %301 = sbr.rel (%p299) target = $region36
        $region35: #{tpu_custom_call.1} parent=11 // pred_region
          %s303 = ssub.s32 3072, 3072
          %304 = vsyncadd [#allocation12], %s303
          %s305 = sshll.u32 [#allocation13], 4
          %s306 = int_to_ptr.vmem [resolvable:$true] %s305
          %311 = dma.hbm_to_vmem [thread:$0]  %s6, 3072, %s306, [#allocation12], 64, 64, 4
        $region36: #{tpu_custom_call.1} parent=11 // pred_fallthru
          _
        // Predicated region
        $region37: #{tpu_custom_call.1} parent=11 // pred_check
          %p312 = pneg %p197
        $region38: #{tpu_custom_call.1} parent=11 // pred_check_branch
          %314 = sbr.rel (%p312) target = $region40
        $region39: #{tpu_custom_call.1} parent=11 // pred_region
          %s316 = ssub.s32 16, 16
          %317 = vsyncadd [#allocation15], %s316
          %s319 = sshll.u32 [#allocation14], 4
          %s320 = int_to_ptr.vmem [resolvable:$true] %s319
          %322 = dma.hbm_to_vmem [thread:$0]  %s7, 16, %s320, [#allocation15]
        $region40: #{tpu_custom_call.1} parent=11 // pred_fallthru
          _
      $region12: #{tpu_custom_call.1} parent=5 // pred_fallthru
        _
      %p323 = scmp.lt.s32.totalorder %s24, 2
      // Predicated region
      $region41: #{tpu_custom_call.1} parent=5 // pred_check
        %p324 = pneg %p323
      $region42: #{tpu_custom_call.1} parent=5 // pred_check_branch
        %326 = sbr.rel (%p324) target = $region44
      $region43: #{tpu_custom_call.1} parent=5 // pred_region
        // Predicated region
        $region45: #{tpu_custom_call.1} parent=43 // pred_check
          %p327 = pneg %p44
        $region46: #{tpu_custom_call.1} parent=43 // pred_check_branch
          %329 = sbr.rel (%p327) target = $region48
        $region47: #{tpu_custom_call.1} parent=43 // pred_region
          %s330 = sand.u32 %s34, 1
          %s331 = scalar_lea.sflag [#allocation3], %s330
          %s332 = sand.u32 %s34, 1
          %s333 = smul.addr %s332, 8
          %s334 = scalar_lea.vmem [#allocation2], %s333
          %s336 = ssub.s32 128, 128
          %337 = vsyncadd %s331, %s336
          %s338 = smul.addr %s24, 128
          %s339 = scalar_lea.hbm %s0, %s338
          %s341 = sshll.u32 %s334, 4
          %s342 = int_to_ptr.vmem [resolvable:$true] %s341
          %344 = dma.hbm_to_vmem [thread:$0]  %s339, 128, %s342, %s331
        $region48: #{tpu_custom_call.1} parent=43 // pred_fallthru
          _
      $region44: #{tpu_custom_call.1} parent=5 // pred_fallthru
        _
      %p345 = scmp.le.s32.totalorder 1, %s24
      %p346 = scmp.lt.s32.totalorder %s24, 3
      %p347 = pnand %p345, %p346
      %p348 = pneg %p347
      // Predicated region
      $region49: #{tpu_custom_call.1} parent=5 // pred_check
        _
      $region50: #{tpu_custom_call.1} parent=5 // pred_check_branch
        %350 = sbr.rel (%p347) target = $region52
      $region51: #{tpu_custom_call.1} parent=5 // pred_region
        %s351 = ssub.s32 %s24, 1
        %s352 = sand.u32 %s37, 1
        %s353 = scalar_lea.sflag [#allocation3], %s352
        %s354 = sand.u32 %s37, 1
        %s355 = smul.addr %s354, 8
        %s356 = scalar_lea.vmem [#allocation2], %s355
        // Predicated region
        $region53: #{tpu_custom_call.1} parent=51 // pred_check
          %p357 = pneg %p50
        $region54: #{tpu_custom_call.1} parent=51 // pred_check_branch
          %359 = sbr.rel (%p357) target = $region56
        $region55: #{tpu_custom_call.1} parent=51 // pred_region
          %360 = dma.done %s353, 128
        $region56: #{tpu_custom_call.1} parent=51 // pred_fallthru
          _
        // Predicated region
        $region57: #{tpu_custom_call.1} parent=51 // pred_check
          %p361 = pneg %p71
        $region58: #{tpu_custom_call.1} parent=51 // pred_check_branch
          %363 = sbr.rel (%p361) target = $region60
        $region59: #{tpu_custom_call.1} parent=51 // pred_region
          %364 = dma.done [#allocation6], 2048
        $region60: #{tpu_custom_call.1} parent=51 // pred_fallthru
          _
        // Predicated region
        $region61: #{tpu_custom_call.1} parent=51 // pred_check
          %p365 = pneg %p92
        $region62: #{tpu_custom_call.1} parent=51 // pred_check_branch
          %367 = sbr.rel (%p365) target = $region64
        $region63: #{tpu_custom_call.1} parent=51 // pred_region
          %368 = dma.done [#allocation6], 3072
        $region64: #{tpu_custom_call.1} parent=51 // pred_fallthru
          _
        // Predicated region
        $region65: #{tpu_custom_call.1} parent=51 // pred_check
          %p369 = pneg %p113
        $region66: #{tpu_custom_call.1} parent=51 // pred_check_branch
          %371 = sbr.rel (%p369) target = $region68
        $region67: #{tpu_custom_call.1} parent=51 // pred_region
          %372 = dma.done [#allocation9], 48
        $region68: #{tpu_custom_call.1} parent=51 // pred_fallthru
          _
        // Predicated region
        $region69: #{tpu_custom_call.1} parent=51 // pred_check
          %p373 = pneg %p134
        $region70: #{tpu_custom_call.1} parent=51 // pred_check_branch
          %375 = sbr.rel (%p373) target = $region72
        $region71: #{tpu_custom_call.1} parent=51 // pred_region
          %376 = dma.done [#allocation9], 9216
        $region72: #{tpu_custom_call.1} parent=51 // pred_fallthru
          _
        // Predicated region
        $region73: #{tpu_custom_call.1} parent=51 // pred_check
          %p377 = pneg %p155
        $region74: #{tpu_custom_call.1} parent=51 // pred_check_branch
          %379 = sbr.rel (%p377) target = $region76
        $region75: #{tpu_custom_call.1} parent=51 // pred_region
          %380 = dma.done [#allocation12], 48
        $region76: #{tpu_custom_call.1} parent=51 // pred_fallthru
          _
        // Predicated region
        $region77: #{tpu_custom_call.1} parent=51 // pred_check
          %p381 = pneg %p176
        $region78: #{tpu_custom_call.1} parent=51 // pred_check_branch
          %383 = sbr.rel (%p381) target = $region80
        $region79: #{tpu_custom_call.1} parent=51 // pred_region
          %384 = dma.done [#allocation12], 3072
        $region80: #{tpu_custom_call.1} parent=51 // pred_fallthru
          _
        // Predicated region
        $region81: #{tpu_custom_call.1} parent=51 // pred_check
          %p385 = pneg %p197
        $region82: #{tpu_custom_call.1} parent=51 // pred_check_branch
          %387 = sbr.rel (%p385) target = $region84
        $region83: #{tpu_custom_call.1} parent=51 // pred_region
          %388 = dma.done [#allocation15], 16
        $region84: #{tpu_custom_call.1} parent=51 // pred_fallthru
          _
        %s389 = sand.u32 %s37, 1
        %s390 = scalar_lea.sflag [#allocation3], %s389
        %s391 = sand.u32 %s37, 1
        %s392 = smul.addr %s391, 8
        %s393 = scalar_lea.vmem [#allocation2], %s392
        %p394 = pneg %p50
        %p395 = pneg %p47
        %p396 = pneg %p71
        %p397 = pneg %p68
        %p398 = pneg %p92
        %p399 = pneg %p89
        %p400 = pneg %p113
        %p401 = pneg %p110
        %p402 = pneg %p134
        %p403 = pneg %p131
        %p404 = pneg %p155
        %p405 = pneg %p152
        %p406 = pneg %p176
        %p407 = pneg %p173
        %p408 = pneg %p197
        %p409 = pneg %p194
        %p410 = pneg %p223
        %p411 = pneg %p220
        %s412 = sand.u32 %s210, 1
        %s413 = scalar_lea.sflag [#allocation4], %s412
        %s414 = sand.u32 %s210, 1
        %s415 = smul.addr %s414, 4
        %s416 = scalar_lea.vmem [#allocation16], %s415
        %v418 = vld [vmem:[%s356] sm:$0xff]
        %v419 = vlaneseq
        %v420 = vand.u32 %v419, 127
        %421 = vset.pattern.permute.xlu0 0
        %422 = vperm.xlu0 %421, %v418
        %v423 = vpop.permute.xlu0 %422
        %vm424 = vcmp.eq.s32.totalorder %v420, %v423
        %v425 = vsel %vm424, 1, 0
        %v426 = vcvt.s32.f32 %v425
        %v427 = vadd.f32 %v426, 0.0
        %428 = vset.pattern.permute.xlu0 1
        %429 = vperm.xlu0 %428, %v418
        %v430 = vpop.permute.xlu0 %429
        %vm431 = vcmp.eq.s32.totalorder %v420, %v430
        %v432 = vsel %vm431, 1, 0
        %v433 = vcvt.s32.f32 %v432
        %v434 = vadd.f32 %v427, %v433
        %435 = vset.pattern.permute.xlu0 2
        %436 = vperm.xlu0 %435, %v418
        %v437 = vpop.permute.xlu0 %436
        %vm438 = vcmp.eq.s32.totalorder %v420, %v437
        %v439 = vsel %vm438, 1, 0
        %v440 = vcvt.s32.f32 %v439
        %v441 = vadd.f32 %v434, %v440
        %442 = vset.pattern.permute.xlu0 3
        %443 = vperm.xlu0 %442, %v418
        %v444 = vpop.permute.xlu0 %443
        %vm445 = vcmp.eq.s32.totalorder %v420, %v444
        %v446 = vsel %vm445, 1, 0
        %v447 = vcvt.s32.f32 %v446
        %v448 = vadd.f32 %v441, %v447
        %449 = vset.pattern.permute.xlu0 4
        %450 = vperm.xlu0 %449, %v418
        %v451 = vpop.permute.xlu0 %450
        %vm452 = vcmp.eq.s32.totalorder %v420, %v451
        %v453 = vsel %vm452, 1, 0
        %v454 = vcvt.s32.f32 %v453
        %v455 = vadd.f32 %v448, %v454
        %456 = vset.pattern.permute.xlu0 5
        %457 = vperm.xlu0 %456, %v418
        %v458 = vpop.permute.xlu0 %457
        %vm459 = vcmp.eq.s32.totalorder %v420, %v458
        %v460 = vsel %vm459, 1, 0
        %v461 = vcvt.s32.f32 %v460
        %v462 = vadd.f32 %v455, %v461
        %463 = vset.pattern.permute.xlu0 6
        %464 = vperm.xlu0 %463, %v418
        %v465 = vpop.permute.xlu0 %464
        %vm466 = vcmp.eq.s32.totalorder %v420, %v465
        %v467 = vsel %vm466, 1, 0
        %v468 = vcvt.s32.f32 %v467
        %v469 = vadd.f32 %v462, %v468
        %470 = vset.pattern.permute.xlu0 7
        %471 = vperm.xlu0 %470, %v418
        %v472 = vpop.permute.xlu0 %471
        %vm473 = vcmp.eq.s32.totalorder %v420, %v472
        %v474 = vsel %vm473, 1, 0
        %v475 = vcvt.s32.f32 %v474
        %v476 = vadd.f32 %v469, %v475
        %v477 = vld [vmem:[#allocation5] sm:$0xff]
        %v478 = vld [vmem:[#allocation5 + $0x8] sm:$0xff]
        %v479 = vld [vmem:[#allocation5 + $0x10] sm:$0xff]
        %v480 = vld [vmem:[#allocation5 + $0x18] sm:$0xff]
        %v481 = vld [vmem:[#allocation5 + $0x20] sm:$0xff]
        %v482 = vld [vmem:[#allocation5 + $0x28] sm:$0xff]
        %v483 = vld [vmem:[#allocation5 + $0x30] sm:$0xff]
        %v484 = vld [vmem:[#allocation5 + $0x38] sm:$0xff]
        %v485 = vld [vmem:[#allocation5 + $0x40] sm:$0xff]
        %v486 = vld [vmem:[#allocation5 + $0x48] sm:$0xff]
        %v487 = vld [vmem:[#allocation5 + $0x50] sm:$0xff]
        %v488 = vld [vmem:[#allocation5 + $0x58] sm:$0xff]
        %v489 = vld [vmem:[#allocation5 + $0x60] sm:$0xff]
        %v490 = vld [vmem:[#allocation5 + $0x68] sm:$0xff]
        %v491 = vld [vmem:[#allocation5 + $0x70] sm:$0xff]
        %v492 = vld [vmem:[#allocation5 + $0x78] sm:$0xff]
        %493 = vmatprep.subr.mxu0 0.0
        %494 = vmatpush1.msra.mxu0 %v477
        %495 = vmatprep.subr.mxu0 0.0
        %496 = vmatpush1.msra.mxu0 %v478
        %497 = vmatprep.subr.mxu0 0.0
        %498 = vmatpush1.msra.mxu0 %v479
        %499 = vmatprep.subr.mxu0 0.0
        %500 = vmatpush1.msra.mxu0 %v480
        %501 = vmatprep.subr.mxu0 0.0
        %502 = vmatpush1.msra.mxu0 %v481
        %503 = vmatprep.subr.mxu0 0.0
        %504 = vmatpush1.msra.mxu0 %v482
        %505 = vmatprep.subr.mxu0 0.0
        %506 = vmatpush1.msra.mxu0 %v483
        %507 = vmatprep.subr.mxu0 0.0
        %508 = vmatpush1.msra.mxu0 %v484
        %509 = vmatprep.subr.mxu0 0.0
        %510 = vmatpush1.msra.mxu0 %v485
        %511 = vmatprep.subr.mxu0 0.0
        %512 = vmatpush1.msra.mxu0 %v486
        %513 = vmatprep.subr.mxu0 0.0
        %514 = vmatpush1.msra.mxu0 %v487
        %515 = vmatprep.subr.mxu0 0.0
        %516 = vmatpush1.msra.mxu0 %v488
        %517 = vmatprep.subr.mxu0 0.0
        %518 = vmatpush1.msra.mxu0 %v489
        %519 = vmatprep.subr.mxu0 0.0
        %520 = vmatpush1.msra.mxu0 %v490
        %521 = vmatprep.subr.mxu0 0.0
        %522 = vmatpush1.msra.mxu0 %v491
        %523 = vmatprep.subr.mxu0 0.0
        %524 = vmatpush1.msra.mxu0 %v492
        %525 = vmatprep.subr.mxu0 0.0
        %526 = vmatpush1.msra.mxu0 0.0
        %527 = vmatprep.subr.mxu0 0.0
        %528 = vmatpush1.msra.mxu0 0.0
        %529 = vmatprep.subr.mxu0 0.0
        %530 = vmatpush1.msra.mxu0 0.0
        %531 = vmatprep.subr.mxu0 0.0
        %532 = vmatpush1.msra.mxu0 0.0
        %533 = vmatprep.subr.mxu0 0.0
        %534 = vmatpush1.msra.mxu0 0.0
        %535 = vmatprep.subr.mxu0 0.0
        %536 = vmatpush1.msra.mxu0 0.0
        %537 = vmatprep.subr.mxu0 0.0
        %538 = vmatpush1.msra.mxu0 0.0
        %539 = vmatprep.subr.mxu0 0.0
        %540 = vmatpush1.msra.mxu0 0.0
        %541 = vmatprep.subr.mxu0 0.0
        %542 = vmatpush1.msra.mxu0 0.0
        %543 = vmatprep.subr.mxu0 0.0
        %544 = vmatpush1.msra.mxu0 0.0
        %545 = vmatprep.subr.mxu0 0.0
        %546 = vmatpush1.msra.mxu0 0.0
        %547 = vmatprep.subr.mxu0 0.0
        %548 = vmatpush1.msra.mxu0 0.0
        %549 = vmatprep.subr.mxu0 0.0
        %550 = vmatpush1.msra.mxu0 0.0
        %551 = vmatprep.subr.mxu0 0.0
        %552 = vmatpush1.msra.mxu0 0.0
        %553 = vmatprep.subr.mxu0 0.0
        %554 = vmatpush1.msra.mxu0 0.0
        %555 = vmatprep.subr.mxu0 0.0
        %556 = vmatpush1.msra.mxu0 0.0
        %557 = vmatprep.mubr.f32.mxu0 0.0
        %558 = vmatmul.mubr.f32.gmra.mrb[0].mxu0 %v476
        %v559 = vpop.f32.mrb[0].mxu0
        %v560 = vadd.f32 0.0, %v559
        %v561 = vpop.f32.mrb[0].mxu0
        %562 = vdwg.mxu0
        %v563 = vpack.c.bf16 %v560, %v560
        %v564 = vld [vmem:[#allocation7] sm:$0xff]
        %v565 = vld [vmem:[#allocation7 + $0x8] sm:$0xf]
        %v566 = vld [vmem:[#allocation7 + $0xc] sm:$0xff]
        %v567 = vld [vmem:[#allocation7 + $0x14] sm:$0xf]
        %v568 = vld [vmem:[#allocation7 + $0x18] sm:$0xff]
        %v569 = vld [vmem:[#allocation7 + $0x20] sm:$0xf]
        %v570 = vld [vmem:[#allocation7 + $0x24] sm:$0xff]
        %v571 = vld [vmem:[#allocation7 + $0x2c] sm:$0xf]
        %v572 = vld [vmem:[#allocation7 + $0x30] sm:$0xff]
        %v573 = vld [vmem:[#allocation7 + $0x38] sm:$0xf]
        %v574 = vld [vmem:[#allocation7 + $0x3c] sm:$0xff]
        %v575 = vld [vmem:[#allocation7 + $0x44] sm:$0xf]
        %v576 = vld [vmem:[#allocation7 + $0x48] sm:$0xff]
        %v577 = vld [vmem:[#allocation7 + $0x50] sm:$0xf]
        %v578 = vld [vmem:[#allocation7 + $0x54] sm:$0xff]
        %v579 = vld [vmem:[#allocation7 + $0x5c] sm:$0xf]
        %v580 = vld [vmem:[#allocation7 + $0x60] sm:$0xff]
        %v581 = vld [vmem:[#allocation7 + $0x68] sm:$0xf]
        %v582 = vld [vmem:[#allocation7 + $0x6c] sm:$0xff]
        %v583 = vld [vmem:[#allocation7 + $0x74] sm:$0xf]
        %v584 = vld [vmem:[#allocation7 + $0x78] sm:$0xff]
        %v585 = vld [vmem:[#allocation7 + $0x80] sm:$0xf]
        %v586 = vld [vmem:[#allocation7 + $0x84] sm:$0xff]
        %v587 = vld [vmem:[#allocation7 + $0x8c] sm:$0xf]
        %v588 = vld [vmem:[#allocation7 + $0x90] sm:$0xff]
        %v589 = vld [vmem:[#allocation7 + $0x98] sm:$0xf]
        %v590 = vld [vmem:[#allocation7 + $0x9c] sm:$0xff]
        %v591 = vld [vmem:[#allocation7 + $0xa4] sm:$0xf]
        %v592 = vld [vmem:[#allocation7 + $0xa8] sm:$0xff]
        %v593 = vld [vmem:[#allocation7 + $0xb0] sm:$0xf]
        %v594 = vld [vmem:[#allocation7 + $0xb4] sm:$0xff]
        %v595 = vld [vmem:[#allocation7 + $0xbc] sm:$0xf]
        %v596 = vld [vmem:[#allocation8] sm:$0x7]
        %v598 = vlaneseq
        %v599 = vshrl.u32 %v598, 7
        %v600 = vsub.s32 0, %v599
        %v601 = vrot.slane %v596, %v600
        %v602 = vlaneseq
        %v603 = vshrl.u32 %v602, 7
        %v604 = vsub.s32 1, %v603
        %v605 = vrot.slane %v596, %v604
        %v606 = vlaneseq
        %v607 = vshrl.u32 %v606, 7
        %v608 = vsub.s32 2, %v607
        %v609 = vrot.slane %v596, %v608
        %v645 = vunpack.c.l.b16 %v564
        %v646 = vunpack.c.h.b16 %v564
        %v647 = vunpack.c.l.b16 %v565
        %v648 = vunpack.c.l.b16 %v566
        %v649 = vunpack.c.h.b16 %v566
        %v650 = vunpack.c.l.b16 %v567
        %v651 = vunpack.c.l.b16 %v568
        %v652 = vunpack.c.h.b16 %v568
        %v653 = vunpack.c.l.b16 %v569
        %v654 = vunpack.c.l.b16 %v570
        %v655 = vunpack.c.h.b16 %v570
        %v656 = vunpack.c.l.b16 %v571
        %v657 = vunpack.c.l.b16 %v572
        %v658 = vunpack.c.h.b16 %v572
        %v659 = vunpack.c.l.b16 %v573
        %v660 = vunpack.c.l.b16 %v574
        %v661 = vunpack.c.h.b16 %v574
        %v662 = vunpack.c.l.b16 %v575
        %v663 = vunpack.c.l.b16 %v576
        %v664 = vunpack.c.h.b16 %v576
        %v665 = vunpack.c.l.b16 %v577
        %v666 = vunpack.c.l.b16 %v578
        %v667 = vunpack.c.h.b16 %v578
        %v668 = vunpack.c.l.b16 %v579
        %v669 = vunpack.c.l.b16 %v580
        %v670 = vunpack.c.h.b16 %v580
        %v671 = vunpack.c.l.b16 %v581
        %v672 = vunpack.c.l.b16 %v582
        %v673 = vunpack.c.h.b16 %v582
        %v674 = vunpack.c.l.b16 %v583
        %v675 = vunpack.c.l.b16 %v584
        %v676 = vunpack.c.h.b16 %v584
        %v677 = vunpack.c.l.b16 %v585
        %v678 = vunpack.c.l.b16 %v586
        %v679 = vunpack.c.h.b16 %v586
        %v680 = vunpack.c.l.b16 %v587
        %v681 = vunpack.c.l.b16 %v588
        %v682 = vunpack.c.h.b16 %v588
        %v683 = vunpack.c.l.b16 %v589
        %v684 = vunpack.c.l.b16 %v590
        %v685 = vunpack.c.h.b16 %v590
        %v686 = vunpack.c.l.b16 %v591
        %v687 = vunpack.c.l.b16 %v592
        %v688 = vunpack.c.h.b16 %v592
        %v689 = vunpack.c.l.b16 %v593
        %v690 = vunpack.c.l.b16 %v594
        %v691 = vunpack.c.h.b16 %v594
        %v692 = vunpack.c.l.b16 %v595
        %v693 = vpack.c.b16 %v648, %v645
        %v694 = vpack.c.b16 %v649, %v646
        %v695 = vpack.c.b16 %v650, %v647
        %v696 = vpack.c.b16 %v654, %v651
        %v697 = vpack.c.b16 %v655, %v652
        %v698 = vpack.c.b16 %v656, %v653
        %v699 = vpack.c.b16 %v660, %v657
        %v700 = vpack.c.b16 %v661, %v658
        %v701 = vpack.c.b16 %v662, %v659
        %v702 = vpack.c.b16 %v666, %v663
        %v703 = vpack.c.b16 %v667, %v664
        %v704 = vpack.c.b16 %v668, %v665
        %v705 = vpack.c.b16 %v672, %v669
        %v706 = vpack.c.b16 %v673, %v670
        %v707 = vpack.c.b16 %v674, %v671
        %v708 = vpack.c.b16 %v678, %v675
        %v709 = vpack.c.b16 %v679, %v676
        %v710 = vpack.c.b16 %v680, %v677
        %v711 = vpack.c.b16 %v684, %v681
        %v712 = vpack.c.b16 %v685, %v682
        %v713 = vpack.c.b16 %v686, %v683
        %v714 = vpack.c.b16 %v690, %v687
        %v715 = vpack.c.b16 %v691, %v688
        %v716 = vpack.c.b16 %v692, %v689
        %741 = vmatprep.subr.bf16.mxu0 %v694
        %742 = vmatpush1.bf16.msra.mxu0 %v693
        %743 = vmatprep.subr.bf16.mxu0 %v697
        %744 = vmatpush1.bf16.msra.mxu0 %v696
        %745 = vmatprep.subr.bf16.mxu0 %v700
        %746 = vmatpush1.bf16.msra.mxu0 %v699
        %747 = vmatprep.subr.bf16.mxu0 %v703
        %748 = vmatpush1.bf16.msra.mxu0 %v702
        %749 = vmatprep.subr.bf16.mxu0 %v706
        %750 = vmatpush1.bf16.msra.mxu0 %v705
        %751 = vmatprep.subr.bf16.mxu0 %v709
        %752 = vmatpush1.bf16.msra.mxu0 %v708
        %753 = vmatprep.subr.bf16.mxu0 %v712
        %754 = vmatpush1.bf16.msra.mxu0 %v711
        %755 = vmatprep.subr.bf16.mxu0 %v715
        %756 = vmatpush1.bf16.msra.mxu0 %v714
        %757 = vmatprep.subr.bf16.mxu0 0
        %758 = vmatpush1.bf16.msra.mxu0 0
        %759 = vmatprep.subr.bf16.mxu0 0
        %760 = vmatpush1.bf16.msra.mxu0 0
        %761 = vmatprep.subr.bf16.mxu0 0
        %762 = vmatpush1.bf16.msra.mxu0 0
        %763 = vmatprep.subr.bf16.mxu0 0
        %764 = vmatpush1.bf16.msra.mxu0 0
        %765 = vmatprep.subr.bf16.mxu0 0
        %766 = vmatpush1.bf16.msra.mxu0 0
        %767 = vmatprep.subr.bf16.mxu0 0
        %768 = vmatpush1.bf16.msra.mxu0 0
        %769 = vmatprep.subr.bf16.mxu0 0
        %770 = vmatpush1.bf16.msra.mxu0 0
        %771 = vmatprep.subr.bf16.mxu0 0
        %772 = vmatpush1.bf16.msra.mxu0 0
        %773 = vmatprep.mubr.bf16.mxu0 0
        %774 = vmatmul.mubr.bf16.gmra.mrb[0].mxu0 %v563
        %v775 = vpop.f32.mrb[0].mxu0
        %v776 = vadd.f32 %v601, %v775
        %v777 = vpop.f32.mrb[0].mxu0
        %v778 = vadd.f32 %v605, %v777
        %v779 = vpop.f32.mrb[0].mxu0
        %v780 = vpop.f32.mrb[0].mxu0
        %781 = vdwg.mxu0
        %782 = vmatprep.subr.bf16.mxu0 0
        %783 = vmatpush1.bf16.msra.mxu0 %v695
        %784 = vmatprep.subr.bf16.mxu0 0
        %785 = vmatpush1.bf16.msra.mxu0 %v698
        %786 = vmatprep.subr.bf16.mxu0 0
        %787 = vmatpush1.bf16.msra.mxu0 %v701
        %788 = vmatprep.subr.bf16.mxu0 0
        %789 = vmatpush1.bf16.msra.mxu0 %v704
        %790 = vmatprep.subr.bf16.mxu0 0
        %791 = vmatpush1.bf16.msra.mxu0 %v707
        %792 = vmatprep.subr.bf16.mxu0 0
        %793 = vmatpush1.bf16.msra.mxu0 %v710
        %794 = vmatprep.subr.bf16.mxu0 0
        %795 = vmatpush1.bf16.msra.mxu0 %v713
        %796 = vmatprep.subr.bf16.mxu0 0
        %797 = vmatpush1.bf16.msra.mxu0 %v716
        %798 = vmatprep.subr.bf16.mxu0 0
        %799 = vmatpush1.bf16.msra.mxu0 0
        %800 = vmatprep.subr.bf16.mxu0 0
        %801 = vmatpush1.bf16.msra.mxu0 0
        %802 = vmatprep.subr.bf16.mxu0 0
        %803 = vmatpush1.bf16.msra.mxu0 0
        %804 = vmatprep.subr.bf16.mxu0 0
        %805 = vmatpush1.bf16.msra.mxu0 0
        %806 = vmatprep.subr.bf16.mxu0 0
        %807 = vmatpush1.bf16.msra.mxu0 0
        %808 = vmatprep.subr.bf16.mxu0 0
        %809 = vmatpush1.bf16.msra.mxu0 0
        %810 = vmatprep.subr.bf16.mxu0 0
        %811 = vmatpush1.bf16.msra.mxu0 0
        %812 = vmatprep.subr.bf16.mxu0 0
        %813 = vmatpush1.bf16.msra.mxu0 0
        %814 = vmatprep.mubr.bf16.mxu0 0
        %815 = vmatmul.mubr.bf16.gmra.mrb[0].mxu0 %v563
        %v816 = vpop.f32.mrb[0].mxu0
        %v817 = vadd.f32 %v609, %v816
        %v818 = vpop.f32.mrb[0].mxu0
        %v819 = vpop.f32.mrb[0].mxu0
        %v820 = vpop.f32.mrb[0].mxu0
        %821 = vdwg.mxu0
        %v822 = vxor.u32 %v776, 2147483648
        %v823 = vxor.u32 %v778, 2147483648
        %v824 = vxor.u32 %v817, 2147483648
        %v825 = vmul.f32 %v822, 1.442695
        %v826 = vpow.pop %v825
        %v827 = vmul.f32 %v823, 1.442695
        %v828 = vpow.pop %v827
        %v829 = vmul.f32 %v824, 1.442695
        %v830 = vpow.pop %v829
        %v831 = vadd.f32 %v826, 1.0
        %v832 = vadd.f32 %v828, 1.0
        %v833 = vadd.f32 %v830, 1.0
        %v834 = vrcp.pop %v831
        %v835 = vmul.f32 1.0, %v834
        %v836 = vrcp.pop %v832
        %v837 = vmul.f32 1.0, %v836
        %v838 = vrcp.pop %v833
        %v839 = vmul.f32 1.0, %v838
        %v840 = vpack.c.bf16 %v835, %v835
        %v841 = vpack.c.bf16 %v837, %v837
        %v842 = vpack.c.bf16 %v839, %v839
        %v843 = vld [vmem:[#allocation10] sm:$0xff]
        %v844 = vld [vmem:[#allocation10 + $0x8] sm:$0xf]
        %v845 = vld [vmem:[#allocation10 + $0xc] sm:$0xff]
        %v846 = vld [vmem:[#allocation10 + $0x14] sm:$0xf]
        %v847 = vld [vmem:[#allocation10 + $0x18] sm:$0xff]
        %v848 = vld [vmem:[#allocation10 + $0x20] sm:$0xf]
        %v849 = vld [vmem:[#allocation10 + $0x24] sm:$0xff]
        %v850 = vld [vmem:[#allocation10 + $0x2c] sm:$0xf]
        %v851 = vld [vmem:[#allocation10 + $0x30] sm:$0xff]
        %v852 = vld [vmem:[#allocation10 + $0x38] sm:$0xf]
        %v853 = vld [vmem:[#allocation10 + $0x3c] sm:$0xff]
        %v854 = vld [vmem:[#allocation10 + $0x44] sm:$0xf]
        %v855 = vld [vmem:[#allocation10 + $0x48] sm:$0xff]
        %v856 = vld [vmem:[#allocation10 + $0x50] sm:$0xf]
        %v857 = vld [vmem:[#allocation10 + $0x54] sm:$0xff]
        %v858 = vld [vmem:[#allocation10 + $0x5c] sm:$0xf]
        %v859 = vld [vmem:[#allocation10 + $0x60] sm:$0xff]
        %v860 = vld [vmem:[#allocation10 + $0x68] sm:$0xf]
        %v861 = vld [vmem:[#allocation10 + $0x6c] sm:$0xff]
        %v862 = vld [vmem:[#allocation10 + $0x74] sm:$0xf]
        %v863 = vld [vmem:[#allocation10 + $0x78] sm:$0xff]
        %v864 = vld [vmem:[#allocation10 + $0x80] sm:$0xf]
        %v865 = vld [vmem:[#allocation10 + $0x84] sm:$0xff]
        %v866 = vld [vmem:[#allocation10 + $0x8c] sm:$0xf]
        %v867 = vld [vmem:[#allocation10 + $0x90] sm:$0xff]
        %v868 = vld [vmem:[#allocation10 + $0x98] sm:$0xf]
        %v869 = vld [vmem:[#allocation10 + $0x9c] sm:$0xff]
        %v870 = vld [vmem:[#allocation10 + $0xa4] sm:$0xf]
        %v871 = vld [vmem:[#allocation10 + $0xa8] sm:$0xff]
        %v872 = vld [vmem:[#allocation10 + $0xb0] sm:$0xf]
        %v873 = vld [vmem:[#allocation10 + $0xb4] sm:$0xff]
        %v874 = vld [vmem:[#allocation10 + $0xbc] sm:$0xf]
        %v875 = vld [vmem:[#allocation10 + $0xc0] sm:$0xff]
        %v876 = vld [vmem:[#allocation10 + $0xc8] sm:$0xf]
        %v877 = vld [vmem:[#allocation10 + $0xcc] sm:$0xff]
        %v878 = vld [vmem:[#allocation10 + $0xd4] sm:$0xf]
        %v879 = vld [vmem:[#allocation10 + $0xd8] sm:$0xff]
        %v880 = vld [vmem:[#allocation10 + $0xe0] sm:$0xf]
        %v881 = vld [vmem:[#allocation10 + $0xe4] sm:$0xff]
        %v882 = vld [vmem:[#allocation10 + $0xec] sm:$0xf]
        %v883 = vld [vmem:[#allocation10 + $0xf0] sm:$0xff]
        %v884 = vld [vmem:[#allocation10 + $0xf8] sm:$0xf]
        %v885 = vld [vmem:[#allocation10 + $0xfc] sm:$0xff]
        %v886 = vld [vmem:[#allocation10 + $0x104] sm:$0xf]
        %v887 = vld [vmem:[#allocation10 + $0x108] sm:$0xff]
        %v888 = vld [vmem:[#allocation10 + $0x110] sm:$0xf]
        %v889 = vld [vmem:[#allocation10 + $0x114] sm:$0xff]
        %v890 = vld [vmem:[#allocation10 + $0x11c] sm:$0xf]
        %v891 = vld [vmem:[#allocation10 + $0x120] sm:$0xff]
        %v892 = vld [vmem:[#allocation10 + $0x128] sm:$0xf]
        %v893 = vld [vmem:[#allocation10 + $0x12c] sm:$0xff]
        %v894 = vld [vmem:[#allocation10 + $0x134] sm:$0xf]
        %v895 = vld [vmem:[#allocation10 + $0x138] sm:$0xff]
        %v896 = vld [vmem:[#allocation10 + $0x140] sm:$0xf]
        %v897 = vld [vmem:[#allocation10 + $0x144] sm:$0xff]
        %v898 = vld [vmem:[#allocation10 + $0x14c] sm:$0xf]
        %v899 = vld [vmem:[#allocation10 + $0x150] sm:$0xff]
        %v900 = vld [vmem:[#allocation10 + $0x158] sm:$0xf]
        %v901 = vld [vmem:[#allocation10 + $0x15c] sm:$0xff]
        %v902 = vld [vmem:[#allocation10 + $0x164] sm:$0xf]
        %v903 = vld [vmem:[#allocation10 + $0x168] sm:$0xff]
        %v904 = vld [vmem:[#allocation10 + $0x170] sm:$0xf]
        %v905 = vld [vmem:[#allocation10 + $0x174] sm:$0xff]
        %v906 = vld [vmem:[#allocation10 + $0x17c] sm:$0xf]
        %v907 = vld [vmem:[#allocation10 + $0x180] sm:$0xff]
        %v908 = vld [vmem:[#allocation10 + $0x188] sm:$0xf]
        %v909 = vld [vmem:[#allocation10 + $0x18c] sm:$0xff]
        %v910 = vld [vmem:[#allocation10 + $0x194] sm:$0xf]
        %v911 = vld [vmem:[#allocation10 + $0x198] sm:$0xff]
        %v912 = vld [vmem:[#allocation10 + $0x1a0] sm:$0xf]
        %v913 = vld [vmem:[#allocation10 + $0x1a4] sm:$0xff]
        %v914 = vld [vmem:[#allocation10 + $0x1ac] sm:$0xf]
        %v915 = vld [vmem:[#allocation10 + $0x1b0] sm:$0xff]
        %v916 = vld [vmem:[#allocation10 + $0x1b8] sm:$0xf]
        %v917 = vld [vmem:[#allocation10 + $0x1bc] sm:$0xff]
        %v918 = vld [vmem:[#allocation10 + $0x1c4] sm:$0xf]
        %v919 = vld [vmem:[#allocation10 + $0x1c8] sm:$0xff]
        %v920 = vld [vmem:[#allocation10 + $0x1d0] sm:$0xf]
        %v921 = vld [vmem:[#allocation10 + $0x1d4] sm:$0xff]
        %v922 = vld [vmem:[#allocation10 + $0x1dc] sm:$0xf]
        %v923 = vld [vmem:[#allocation10 + $0x1e0] sm:$0xff]
        %v924 = vld [vmem:[#allocation10 + $0x1e8] sm:$0xf]
        %v925 = vld [vmem:[#allocation10 + $0x1ec] sm:$0xff]
        %v926 = vld [vmem:[#allocation10 + $0x1f4] sm:$0xf]
        %v927 = vld [vmem:[#allocation10 + $0x1f8] sm:$0xff]
        %v928 = vld [vmem:[#allocation10 + $0x200] sm:$0xf]
        %v929 = vld [vmem:[#allocation10 + $0x204] sm:$0xff]
        %v930 = vld [vmem:[#allocation10 + $0x20c] sm:$0xf]
        %v931 = vld [vmem:[#allocation10 + $0x210] sm:$0xff]
        %v932 = vld [vmem:[#allocation10 + $0x218] sm:$0xf]
        %v933 = vld [vmem:[#allocation10 + $0x21c] sm:$0xff]
        %v934 = vld [vmem:[#allocation10 + $0x224] sm:$0xf]
        %v935 = vld [vmem:[#allocation10 + $0x228] sm:$0xff]
        %v936 = vld [vmem:[#allocation10 + $0x230] sm:$0xf]
        %v937 = vld [vmem:[#allocation10 + $0x234] sm:$0xff]
        %v938 = vld [vmem:[#allocation10 + $0x23c] sm:$0xf]
        %v939 = vld [vmem:[#allocation11] sm:$0x7]
        %v941 = vlaneseq
        %v942 = vshrl.u32 %v941, 7
        %v943 = vsub.s32 0, %v942
        %v944 = vrot.slane %v939, %v943
        %v945 = vlaneseq
        %v946 = vshrl.u32 %v945, 7
        %v947 = vsub.s32 1, %v946
        %v948 = vrot.slane %v939, %v947
        %v949 = vlaneseq
        %v950 = vshrl.u32 %v949, 7
        %v951 = vsub.s32 2, %v950
        %v952 = vrot.slane %v939, %v951
        %v1052 = vunpack.c.l.b16 %v843
        %v1053 = vunpack.c.h.b16 %v843
        %v1054 = vunpack.c.l.b16 %v844
        %v1055 = vunpack.c.l.b16 %v845
        %v1056 = vunpack.c.h.b16 %v845
        %v1057 = vunpack.c.l.b16 %v846
        %v1058 = vunpack.c.l.b16 %v847
        %v1059 = vunpack.c.h.b16 %v847
        %v1060 = vunpack.c.l.b16 %v848
        %v1061 = vunpack.c.l.b16 %v849
        %v1062 = vunpack.c.h.b16 %v849
        %v1063 = vunpack.c.l.b16 %v850
        %v1064 = vunpack.c.l.b16 %v851
        %v1065 = vunpack.c.h.b16 %v851
        %v1066 = vunpack.c.l.b16 %v852
        %v1067 = vunpack.c.l.b16 %v853
        %v1068 = vunpack.c.h.b16 %v853
        %v1069 = vunpack.c.l.b16 %v854
        %v1070 = vunpack.c.l.b16 %v855
        %v1071 = vunpack.c.h.b16 %v855
        %v1072 = vunpack.c.l.b16 %v856
        %v1073 = vunpack.c.l.b16 %v857
        %v1074 = vunpack.c.h.b16 %v857
        %v1075 = vunpack.c.l.b16 %v858
        %v1076 = vunpack.c.l.b16 %v859
        %v1077 = vunpack.c.h.b16 %v859
        %v1078 = vunpack.c.l.b16 %v860
        %v1079 = vunpack.c.l.b16 %v861
        %v1080 = vunpack.c.h.b16 %v861
        %v1081 = vunpack.c.l.b16 %v862
        %v1082 = vunpack.c.l.b16 %v863
        %v1083 = vunpack.c.h.b16 %v863
        %v1084 = vunpack.c.l.b16 %v864
        %v1085 = vunpack.c.l.b16 %v865
        %v1086 = vunpack.c.h.b16 %v865
        %v1087 = vunpack.c.l.b16 %v866
        %v1088 = vunpack.c.l.b16 %v867
        %v1089 = vunpack.c.h.b16 %v867
        %v1090 = vunpack.c.l.b16 %v868
        %v1091 = vunpack.c.l.b16 %v869
        %v1092 = vunpack.c.h.b16 %v869
        %v1093 = vunpack.c.l.b16 %v870
        %v1094 = vunpack.c.l.b16 %v871
        %v1095 = vunpack.c.h.b16 %v871
        %v1096 = vunpack.c.l.b16 %v872
        %v1097 = vunpack.c.l.b16 %v873
        %v1098 = vunpack.c.h.b16 %v873
        %v1099 = vunpack.c.l.b16 %v874
        %v1100 = vunpack.c.l.b16 %v875
        %v1101 = vunpack.c.h.b16 %v875
        %v1102 = vunpack.c.l.b16 %v876
        %v1103 = vunpack.c.l.b16 %v877
        %v1104 = vunpack.c.h.b16 %v877
        %v1105 = vunpack.c.l.b16 %v878
        %v1106 = vunpack.c.l.b16 %v879
        %v1107 = vunpack.c.h.b16 %v879
        %v1108 = vunpack.c.l.b16 %v880
        %v1109 = vunpack.c.l.b16 %v881
        %v1110 = vunpack.c.h.b16 %v881
        %v1111 = vunpack.c.l.b16 %v882
        %v1112 = vunpack.c.l.b16 %v883
        %v1113 = vunpack.c.h.b16 %v883
        %v1114 = vunpack.c.l.b16 %v884
        %v1115 = vunpack.c.l.b16 %v885
        %v1116 = vunpack.c.h.b16 %v885
        %v1117 = vunpack.c.l.b16 %v886
        %v1118 = vunpack.c.l.b16 %v887
        %v1119 = vunpack.c.h.b16 %v887
        %v1120 = vunpack.c.l.b16 %v888
        %v1121 = vunpack.c.l.b16 %v889
        %v1122 = vunpack.c.h.b16 %v889
        %v1123 = vunpack.c.l.b16 %v890
        %v1124 = vunpack.c.l.b16 %v891
        %v1125 = vunpack.c.h.b16 %v891
        %v1126 = vunpack.c.l.b16 %v892
        %v1127 = vunpack.c.l.b16 %v893
        %v1128 = vunpack.c.h.b16 %v893
        %v1129 = vunpack.c.l.b16 %v894
        %v1130 = vunpack.c.l.b16 %v895
        %v1131 = vunpack.c.h.b16 %v895
        %v1132 = vunpack.c.l.b16 %v896
        %v1133 = vunpack.c.l.b16 %v897
        %v1134 = vunpack.c.h.b16 %v897
        %v1135 = vunpack.c.l.b16 %v898
        %v1136 = vunpack.c.l.b16 %v899
        %v1137 = vunpack.c.h.b16 %v899
        %v1138 = vunpack.c.l.b16 %v900
        %v1139 = vunpack.c.l.b16 %v901
        %v1140 = vunpack.c.h.b16 %v901
        %v1141 = vunpack.c.l.b16 %v902
        %v1142 = vunpack.c.l.b16 %v903
        %v1143 = vunpack.c.h.b16 %v903
        %v1144 = vunpack.c.l.b16 %v904
        %v1145 = vunpack.c.l.b16 %v905
        %v1146 = vunpack.c.h.b16 %v905
        %v1147 = vunpack.c.l.b16 %v906
        %v1148 = vunpack.c.l.b16 %v907
        %v1149 = vunpack.c.h.b16 %v907
        %v1150 = vunpack.c.l.b16 %v908
        %v1151 = vunpack.c.l.b16 %v909
        %v1152 = vunpack.c.h.b16 %v909
        %v1153 = vunpack.c.l.b16 %v910
        %v1154 = vunpack.c.l.b16 %v911
        %v1155 = vunpack.c.h.b16 %v911
        %v1156 = vunpack.c.l.b16 %v912
        %v1157 = vunpack.c.l.b16 %v913
        %v1158 = vunpack.c.h.b16 %v913
        %v1159 = vunpack.c.l.b16 %v914
        %v1160 = vunpack.c.l.b16 %v915
        %v1161 = vunpack.c.h.b16 %v915
        %v1162 = vunpack.c.l.b16 %v916
        %v1163 = vunpack.c.l.b16 %v917
        %v1164 = vunpack.c.h.b16 %v917
        %v1165 = vunpack.c.l.b16 %v918
        %v1166 = vunpack.c.l.b16 %v919
        %v1167 = vunpack.c.h.b16 %v919
        %v1168 = vunpack.c.l.b16 %v920
        %v1169 = vunpack.c.l.b16 %v921
        %v1170 = vunpack.c.h.b16 %v921
        %v1171 = vunpack.c.l.b16 %v922
        %v1172 = vunpack.c.l.b16 %v923
        %v1173 = vunpack.c.h.b16 %v923
        %v1174 = vunpack.c.l.b16 %v924
        %v1175 = vunpack.c.l.b16 %v925
        %v1176 = vunpack.c.h.b16 %v925
        %v1177 = vunpack.c.l.b16 %v926
        %v1178 = vunpack.c.l.b16 %v927
        %v1179 = vunpack.c.h.b16 %v927
        %v1180 = vunpack.c.l.b16 %v928
        %v1181 = vunpack.c.l.b16 %v929
        %v1182 = vunpack.c.h.b16 %v929
        %v1183 = vunpack.c.l.b16 %v930
        %v1184 = vunpack.c.l.b16 %v931
        %v1185 = vunpack.c.h.b16 %v931
        %v1186 = vunpack.c.l.b16 %v932
        %v1187 = vunpack.c.l.b16 %v933
        %v1188 = vunpack.c.h.b16 %v933
        %v1189 = vunpack.c.l.b16 %v934
        %v1190 = vunpack.c.l.b16 %v935
        %v1191 = vunpack.c.h.b16 %v935
        %v1192 = vunpack.c.l.b16 %v936
        %v1193 = vunpack.c.l.b16 %v937
        %v1194 = vunpack.c.h.b16 %v937
        %v1195 = vunpack.c.l.b16 %v938
        %v1196 = vpack.c.b16 %v1055, %v1052
        %v1197 = vpack.c.b16 %v1056, %v1053
        %v1198 = vpack.c.b16 %v1057, %v1054
        %v1199 = vpack.c.b16 %v1061, %v1058
        %v1200 = vpack.c.b16 %v1062, %v1059
        %v1201 = vpack.c.b16 %v1063, %v1060
        %v1202 = vpack.c.b16 %v1067, %v1064
        %v1203 = vpack.c.b16 %v1068, %v1065
        %v1204 = vpack.c.b16 %v1069, %v1066
        %v1205 = vpack.c.b16 %v1073, %v1070
        %v1206 = vpack.c.b16 %v1074, %v1071
        %v1207 = vpack.c.b16 %v1075, %v1072
        %v1208 = vpack.c.b16 %v1079, %v1076
        %v1209 = vpack.c.b16 %v1080, %v1077
        %v1210 = vpack.c.b16 %v1081, %v1078
        %v1211 = vpack.c.b16 %v1085, %v1082
        %v1212 = vpack.c.b16 %v1086, %v1083
        %v1213 = vpack.c.b16 %v1087, %v1084
        %v1214 = vpack.c.b16 %v1091, %v1088
        %v1215 = vpack.c.b16 %v1092, %v1089
        %v1216 = vpack.c.b16 %v1093, %v1090
        %v1217 = vpack.c.b16 %v1097, %v1094
        %v1218 = vpack.c.b16 %v1098, %v1095
        %v1219 = vpack.c.b16 %v1099, %v1096
        %v1220 = vpack.c.b16 %v1103, %v1100
        %v1221 = vpack.c.b16 %v1104, %v1101
        %v1222 = vpack.c.b16 %v1105, %v1102
        %v1223 = vpack.c.b16 %v1109, %v1106
        %v1224 = vpack.c.b16 %v1110, %v1107
        %v1225 = vpack.c.b16 %v1111, %v1108
        %v1226 = vpack.c.b16 %v1115, %v1112
        %v1227 = vpack.c.b16 %v1116, %v1113
        %v1228 = vpack.c.b16 %v1117, %v1114
        %v1229 = vpack.c.b16 %v1121, %v1118
        %v1230 = vpack.c.b16 %v1122, %v1119
        %v1231 = vpack.c.b16 %v1123, %v1120
        %v1232 = vpack.c.b16 %v1127, %v1124
        %v1233 = vpack.c.b16 %v1128, %v1125
        %v1234 = vpack.c.b16 %v1129, %v1126
        %v1235 = vpack.c.b16 %v1133, %v1130
        %v1236 = vpack.c.b16 %v1134, %v1131
        %v1237 = vpack.c.b16 %v1135, %v1132
        %v1238 = vpack.c.b16 %v1139, %v1136
        %v1239 = vpack.c.b16 %v1140, %v1137
        %v1240 = vpack.c.b16 %v1141, %v1138
        %v1241 = vpack.c.b16 %v1145, %v1142
        %v1242 = vpack.c.b16 %v1146, %v1143
        %v1243 = vpack.c.b16 %v1147, %v1144
        %v1244 = vpack.c.b16 %v1151, %v1148
        %v1245 = vpack.c.b16 %v1152, %v1149
        %v1246 = vpack.c.b16 %v1153, %v1150
        %v1247 = vpack.c.b16 %v1157, %v1154
        %v1248 = vpack.c.b16 %v1158, %v1155
        %v1249 = vpack.c.b16 %v1159, %v1156
        %v1250 = vpack.c.b16 %v1163, %v1160
        %v1251 = vpack.c.b16 %v1164, %v1161
        %v1252 = vpack.c.b16 %v1165, %v1162
        %v1253 = vpack.c.b16 %v1169, %v1166
        %v1254 = vpack.c.b16 %v1170, %v1167
        %v1255 = vpack.c.b16 %v1171, %v1168
        %v1256 = vpack.c.b16 %v1175, %v1172
        %v1257 = vpack.c.b16 %v1176, %v1173
        %v1258 = vpack.c.b16 %v1177, %v1174
        %v1259 = vpack.c.b16 %v1181, %v1178
        %v1260 = vpack.c.b16 %v1182, %v1179
        %v1261 = vpack.c.b16 %v1183, %v1180
        %v1262 = vpack.c.b16 %v1187, %v1184
        %v1263 = vpack.c.b16 %v1188, %v1185
        %v1264 = vpack.c.b16 %v1189, %v1186
        %v1265 = vpack.c.b16 %v1193, %v1190
        %v1266 = vpack.c.b16 %v1194, %v1191
        %v1267 = vpack.c.b16 %v1195, %v1192
        %1340 = vmatprep.subr.bf16.mxu0 %v1197
        %1341 = vmatpush1.bf16.msra.mxu0 %v1196
        %1342 = vmatprep.subr.bf16.mxu0 %v1200
        %1343 = vmatpush1.bf16.msra.mxu0 %v1199
        %1344 = vmatprep.subr.bf16.mxu0 %v1203
        %1345 = vmatpush1.bf16.msra.mxu0 %v1202
        %1346 = vmatprep.subr.bf16.mxu0 %v1206
        %1347 = vmatpush1.bf16.msra.mxu0 %v1205
        %1348 = vmatprep.subr.bf16.mxu0 %v1209
        %1349 = vmatpush1.bf16.msra.mxu0 %v1208
        %1350 = vmatprep.subr.bf16.mxu0 %v1212
        %1351 = vmatpush1.bf16.msra.mxu0 %v1211
        %1352 = vmatprep.subr.bf16.mxu0 %v1215
        %1353 = vmatpush1.bf16.msra.mxu0 %v1214
        %1354 = vmatprep.subr.bf16.mxu0 %v1218
        %1355 = vmatpush1.bf16.msra.mxu0 %v1217
        %1356 = vmatprep.subr.bf16.mxu0 %v1221
        %1357 = vmatpush1.bf16.msra.mxu0 %v1220
        %1358 = vmatprep.subr.bf16.mxu0 %v1224
        %1359 = vmatpush1.bf16.msra.mxu0 %v1223
        %1360 = vmatprep.subr.bf16.mxu0 %v1227
        %1361 = vmatpush1.bf16.msra.mxu0 %v1226
        %1362 = vmatprep.subr.bf16.mxu0 %v1230
        %1363 = vmatpush1.bf16.msra.mxu0 %v1229
        %1364 = vmatprep.subr.bf16.mxu0 %v1233
        %1365 = vmatpush1.bf16.msra.mxu0 %v1232
        %1366 = vmatprep.subr.bf16.mxu0 %v1236
        %1367 = vmatpush1.bf16.msra.mxu0 %v1235
        %1368 = vmatprep.subr.bf16.mxu0 %v1239
        %1369 = vmatpush1.bf16.msra.mxu0 %v1238
        %1370 = vmatprep.subr.bf16.mxu0 %v1242
        %1371 = vmatpush1.bf16.msra.mxu0 %v1241
        %1372 = vmatprep.mubr.bf16.mxu0 %v841
        %1373 = vmatmul.mubr.bf16.gmra.mrb[0].mxu0 %v840
        %v1374 = vpop.f32.mrb[0].mxu0
        %v1375 = vadd.f32 %v944, %v1374
        %v1376 = vpop.f32.mrb[0].mxu0
        %v1377 = vadd.f32 %v948, %v1376
        %v1378 = vpop.f32.mrb[0].mxu0
        %v1379 = vpop.f32.mrb[0].mxu0
        %1380 = vdwg.mxu0
        %1381 = vmatprep.subr.bf16.mxu0 %v1245
        %1382 = vmatpush1.bf16.msra.mxu0 %v1244
        %1383 = vmatprep.subr.bf16.mxu0 %v1248
        %1384 = vmatpush1.bf16.msra.mxu0 %v1247
        %1385 = vmatprep.subr.bf16.mxu0 %v1251
        %1386 = vmatpush1.bf16.msra.mxu0 %v1250
        %1387 = vmatprep.subr.bf16.mxu0 %v1254
        %1388 = vmatpush1.bf16.msra.mxu0 %v1253
        %1389 = vmatprep.subr.bf16.mxu0 %v1257
        %1390 = vmatpush1.bf16.msra.mxu0 %v1256
        %1391 = vmatprep.subr.bf16.mxu0 %v1260
        %1392 = vmatpush1.bf16.msra.mxu0 %v1259
        %1393 = vmatprep.subr.bf16.mxu0 %v1263
        %1394 = vmatpush1.bf16.msra.mxu0 %v1262
        %1395 = vmatprep.subr.bf16.mxu0 %v1266
        %1396 = vmatpush1.bf16.msra.mxu0 %v1265
        %1397 = vmatprep.subr.bf16.mxu0 0
        %1398 = vmatpush1.bf16.msra.mxu0 0
        %1399 = vmatprep.subr.bf16.mxu0 0
        %1400 = vmatpush1.bf16.msra.mxu0 0
        %1401 = vmatprep.subr.bf16.mxu0 0
        %1402 = vmatpush1.bf16.msra.mxu0 0
        %1403 = vmatprep.subr.bf16.mxu0 0
        %1404 = vmatpush1.bf16.msra.mxu0 0
        %1405 = vmatprep.subr.bf16.mxu0 0
        %1406 = vmatpush1.bf16.msra.mxu0 0
        %1407 = vmatprep.subr.bf16.mxu0 0
        %1408 = vmatpush1.bf16.msra.mxu0 0
        %1409 = vmatprep.subr.bf16.mxu0 0
        %1410 = vmatpush1.bf16.msra.mxu0 0
        %1411 = vmatprep.subr.bf16.mxu0 0
        %1412 = vmatpush1.bf16.msra.mxu0 0
        %1413 = vmatprep.mubr.bf16.mxu0 0
        %1414 = vmatmul.mubr.bf16.gmra.mrb[0].mxu0 %v842
        %v1415 = vpop.f32.mrb[0].mxu0
        %v1416 = vadd.f32 %v1375, %v1415
        %v1417 = vpop.f32.mrb[0].mxu0
        %v1418 = vadd.f32 %v1377, %v1417
        %v1419 = vpop.f32.mrb[0].mxu0
        %v1420 = vpop.f32.mrb[0].mxu0
        %1421 = vdwg.mxu0
        %1422 = vmatprep.subr.bf16.mxu0 0
        %1423 = vmatpush1.bf16.msra.mxu0 %v1198
        %1424 = vmatprep.subr.bf16.mxu0 0
        %1425 = vmatpush1.bf16.msra.mxu0 %v1201
        %1426 = vmatprep.subr.bf16.mxu0 0
        %1427 = vmatpush1.bf16.msra.mxu0 %v1204
        %1428 = vmatprep.subr.bf16.mxu0 0
        %1429 = vmatpush1.bf16.msra.mxu0 %v1207
        %1430 = vmatprep.subr.bf16.mxu0 0
        %1431 = vmatpush1.bf16.msra.mxu0 %v1210
        %1432 = vmatprep.subr.bf16.mxu0 0
        %1433 = vmatpush1.bf16.msra.mxu0 %v1213
        %1434 = vmatprep.subr.bf16.mxu0 0
        %1435 = vmatpush1.bf16.msra.mxu0 %v1216
        %1436 = vmatprep.subr.bf16.mxu0 0
        %1437 = vmatpush1.bf16.msra.mxu0 %v1219
        %1438 = vmatprep.subr.bf16.mxu0 0
        %1439 = vmatpush1.bf16.msra.mxu0 %v1222
        %1440 = vmatprep.subr.bf16.mxu0 0
        %1441 = vmatpush1.bf16.msra.mxu0 %v1225
        %1442 = vmatprep.subr.bf16.mxu0 0
        %1443 = vmatpush1.bf16.msra.mxu0 %v1228
        %1444 = vmatprep.subr.bf16.mxu0 0
        %1445 = vmatpush1.bf16.msra.mxu0 %v1231
        %1446 = vmatprep.subr.bf16.mxu0 0
        %1447 = vmatpush1.bf16.msra.mxu0 %v1234
        %1448 = vmatprep.subr.bf16.mxu0 0
        %1449 = vmatpush1.bf16.msra.mxu0 %v1237
        %1450 = vmatprep.subr.bf16.mxu0 0
        %1451 = vmatpush1.bf16.msra.mxu0 %v1240
        %1452 = vmatprep.subr.bf16.mxu0 0
        %1453 = vmatpush1.bf16.msra.mxu0 %v1243
        %1454 = vmatprep.mubr.bf16.mxu0 %v841
        %1455 = vmatmul.mubr.bf16.gmra.mrb[0].mxu0 %v840
        %v1456 = vpop.f32.mrb[0].mxu0
        %v1457 = vadd.f32 %v952, %v1456
        %v1458 = vpop.f32.mrb[0].mxu0
        %v1459 = vpop.f32.mrb[0].mxu0
        %v1460 = vpop.f32.mrb[0].mxu0
        %1461 = vdwg.mxu0
        %1462 = vmatprep.subr.bf16.mxu0 0
        %1463 = vmatpush1.bf16.msra.mxu0 %v1246
        %1464 = vmatprep.subr.bf16.mxu0 0
        %1465 = vmatpush1.bf16.msra.mxu0 %v1249
        %1466 = vmatprep.subr.bf16.mxu0 0
        %1467 = vmatpush1.bf16.msra.mxu0 %v1252
        %1468 = vmatprep.subr.bf16.mxu0 0
        %1469 = vmatpush1.bf16.msra.mxu0 %v1255
        %1470 = vmatprep.subr.bf16.mxu0 0
        %1471 = vmatpush1.bf16.msra.mxu0 %v1258
        %1472 = vmatprep.subr.bf16.mxu0 0
        %1473 = vmatpush1.bf16.msra.mxu0 %v1261
        %1474 = vmatprep.subr.bf16.mxu0 0
        %1475 = vmatpush1.bf16.msra.mxu0 %v1264
        %1476 = vmatprep.subr.bf16.mxu0 0
        %1477 = vmatpush1.bf16.msra.mxu0 %v1267
        %1478 = vmatprep.subr.bf16.mxu0 0
        %1479 = vmatpush1.bf16.msra.mxu0 0
        %1480 = vmatprep.subr.bf16.mxu0 0
        %1481 = vmatpush1.bf16.msra.mxu0 0
        %1482 = vmatprep.subr.bf16.mxu0 0
        %1483 = vmatpush1.bf16.msra.mxu0 0
        %1484 = vmatprep.subr.bf16.mxu0 0
        %1485 = vmatpush1.bf16.msra.mxu0 0
        %1486 = vmatprep.subr.bf16.mxu0 0
        %1487 = vmatpush1.bf16.msra.mxu0 0
        %1488 = vmatprep.subr.bf16.mxu0 0
        %1489 = vmatpush1.bf16.msra.mxu0 0
        %1490 = vmatprep.subr.bf16.mxu0 0
        %1491 = vmatpush1.bf16.msra.mxu0 0
        %1492 = vmatprep.subr.bf16.mxu0 0
        %1493 = vmatpush1.bf16.msra.mxu0 0
        %1494 = vmatprep.mubr.bf16.mxu0 0
        %1495 = vmatmul.mubr.bf16.gmra.mrb[0].mxu0 %v842
        %v1496 = vpop.f32.mrb[0].mxu0
        %v1497 = vadd.f32 %v1457, %v1496
        %v1498 = vpop.f32.mrb[0].mxu0
        %v1499 = vpop.f32.mrb[0].mxu0
        %v1500 = vpop.f32.mrb[0].mxu0
        %1501 = vdwg.mxu0
        %v1502 = vxor.u32 %v1416, 2147483648
        %v1503 = vxor.u32 %v1418, 2147483648
        %v1504 = vxor.u32 %v1497, 2147483648
        %v1505 = vmul.f32 %v1502, 1.442695
        %v1506 = vpow.pop %v1505
        %v1507 = vmul.f32 %v1503, 1.442695
        %v1508 = vpow.pop %v1507
        %v1509 = vmul.f32 %v1504, 1.442695
        %v1510 = vpow.pop %v1509
        %v1511 = vadd.f32 %v1506, 1.0
        %v1512 = vadd.f32 %v1508, 1.0
        %v1513 = vadd.f32 %v1510, 1.0
        %v1514 = vrcp.pop %v1511
        %v1515 = vmul.f32 1.0, %v1514
        %v1516 = vrcp.pop %v1512
        %v1517 = vmul.f32 1.0, %v1516
        %v1518 = vrcp.pop %v1513
        %v1519 = vmul.f32 1.0, %v1518
        %v1520 = vpack.c.bf16 %v1515, %v1515
        %v1521 = vpack.c.bf16 %v1517, %v1517
        %v1522 = vpack.c.bf16 %v1519, %v1519
        %v1523 = vld [vmem:[#allocation13] sm:$0xf]
        %v1524 = vld [vmem:[#allocation13 + $0x4] sm:$0xf]
        %v1525 = vld [vmem:[#allocation13 + $0x8] sm:$0xf]
        %v1526 = vld [vmem:[#allocation13 + $0xc] sm:$0xf]
        %v1527 = vld [vmem:[#allocation13 + $0x10] sm:$0xf]
        %v1528 = vld [vmem:[#allocation13 + $0x14] sm:$0xf]
        %v1529 = vld [vmem:[#allocation13 + $0x18] sm:$0xf]
        %v1530 = vld [vmem:[#allocation13 + $0x1c] sm:$0xf]
        %v1531 = vld [vmem:[#allocation13 + $0x20] sm:$0xf]
        %v1532 = vld [vmem:[#allocation13 + $0x24] sm:$0xf]
        %v1533 = vld [vmem:[#allocation13 + $0x28] sm:$0xf]
        %v1534 = vld [vmem:[#allocation13 + $0x2c] sm:$0xf]
        %v1535 = vld [vmem:[#allocation13 + $0x30] sm:$0xf]
        %v1536 = vld [vmem:[#allocation13 + $0x34] sm:$0xf]
        %v1537 = vld [vmem:[#allocation13 + $0x38] sm:$0xf]
        %v1538 = vld [vmem:[#allocation13 + $0x3c] sm:$0xf]
        %v1539 = vld [vmem:[#allocation13 + $0x40] sm:$0xf]
        %v1540 = vld [vmem:[#allocation13 + $0x44] sm:$0xf]
        %v1541 = vld [vmem:[#allocation13 + $0x48] sm:$0xf]
        %v1542 = vld [vmem:[#allocation13 + $0x4c] sm:$0xf]
        %v1543 = vld [vmem:[#allocation13 + $0x50] sm:$0xf]
        %v1544 = vld [vmem:[#allocation13 + $0x54] sm:$0xf]
        %v1545 = vld [vmem:[#allocation13 + $0x58] sm:$0xf]
        %v1546 = vld [vmem:[#allocation13 + $0x5c] sm:$0xf]
        %v1547 = vld [vmem:[#allocation13 + $0x60] sm:$0xf]
        %v1548 = vld [vmem:[#allocation13 + $0x64] sm:$0xf]
        %v1549 = vld [vmem:[#allocation13 + $0x68] sm:$0xf]
        %v1550 = vld [vmem:[#allocation13 + $0x6c] sm:$0xf]
        %v1551 = vld [vmem:[#allocation13 + $0x70] sm:$0xf]
        %v1552 = vld [vmem:[#allocation13 + $0x74] sm:$0xf]
        %v1553 = vld [vmem:[#allocation13 + $0x78] sm:$0xf]
        %v1554 = vld [vmem:[#allocation13 + $0x7c] sm:$0xf]
        %v1555 = vld [vmem:[#allocation13 + $0x80] sm:$0xf]
        %v1556 = vld [vmem:[#allocation13 + $0x84] sm:$0xf]
        %v1557 = vld [vmem:[#allocation13 + $0x88] sm:$0xf]
        %v1558 = vld [vmem:[#allocation13 + $0x8c] sm:$0xf]
        %v1559 = vld [vmem:[#allocation13 + $0x90] sm:$0xf]
        %v1560 = vld [vmem:[#allocation13 + $0x94] sm:$0xf]
        %v1561 = vld [vmem:[#allocation13 + $0x98] sm:$0xf]
        %v1562 = vld [vmem:[#allocation13 + $0x9c] sm:$0xf]
        %v1563 = vld [vmem:[#allocation13 + $0xa0] sm:$0xf]
        %v1564 = vld [vmem:[#allocation13 + $0xa4] sm:$0xf]
        %v1565 = vld [vmem:[#allocation13 + $0xa8] sm:$0xf]
        %v1566 = vld [vmem:[#allocation13 + $0xac] sm:$0xf]
        %v1567 = vld [vmem:[#allocation13 + $0xb0] sm:$0xf]
        %v1568 = vld [vmem:[#allocation13 + $0xb4] sm:$0xf]
        %v1569 = vld [vmem:[#allocation13 + $0xb8] sm:$0xf]
        %v1570 = vld [vmem:[#allocation13 + $0xbc] sm:$0xf]
        %v1571 = vld [vmem:[#allocation14] sm:$0x1]
        %v1573 = vlaneseq
        %v1574 = vshrl.u32 %v1573, 7
        %v1575 = vsub.s32 0, %v1574
        %v1576 = vrot.slane %v1571, %v1575
        %v1626 = vunpack.c.l.b16 %v1523
        %v1627 = vunpack.c.l.b16 %v1524
        %v1628 = vunpack.c.l.b16 %v1525
        %v1629 = vunpack.c.l.b16 %v1526
        %v1630 = vunpack.c.l.b16 %v1527
        %v1631 = vunpack.c.l.b16 %v1528
        %v1632 = vunpack.c.l.b16 %v1529
        %v1633 = vunpack.c.l.b16 %v1530
        %v1634 = vunpack.c.l.b16 %v1531
        %v1635 = vunpack.c.l.b16 %v1532
        %v1636 = vunpack.c.l.b16 %v1533
        %v1637 = vunpack.c.l.b16 %v1534
        %v1638 = vunpack.c.l.b16 %v1535
        %v1639 = vunpack.c.l.b16 %v1536
        %v1640 = vunpack.c.l.b16 %v1537
        %v1641 = vunpack.c.l.b16 %v1538
        %v1642 = vunpack.c.l.b16 %v1539
        %v1643 = vunpack.c.l.b16 %v1540
        %v1644 = vunpack.c.l.b16 %v1541
        %v1645 = vunpack.c.l.b16 %v1542
        %v1646 = vunpack.c.l.b16 %v1543
        %v1647 = vunpack.c.l.b16 %v1544
        %v1648 = vunpack.c.l.b16 %v1545
        %v1649 = vunpack.c.l.b16 %v1546
        %v1650 = vunpack.c.l.b16 %v1547
        %v1651 = vunpack.c.l.b16 %v1548
        %v1652 = vunpack.c.l.b16 %v1549
        %v1653 = vunpack.c.l.b16 %v1550
        %v1654 = vunpack.c.l.b16 %v1551
        %v1655 = vunpack.c.l.b16 %v1552
        %v1656 = vunpack.c.l.b16 %v1553
        %v1657 = vunpack.c.l.b16 %v1554
        %v1658 = vunpack.c.l.b16 %v1555
        %v1659 = vunpack.c.l.b16 %v1556
        %v1660 = vunpack.c.l.b16 %v1557
        %v1661 = vunpack.c.l.b16 %v1558
        %v1662 = vunpack.c.l.b16 %v1559
        %v1663 = vunpack.c.l.b16 %v1560
        %v1664 = vunpack.c.l.b16 %v1561
        %v1665 = vunpack.c.l.b16 %v1562
        %v1666 = vunpack.c.l.b16 %v1563
        %v1667 = vunpack.c.l.b16 %v1564
        %v1668 = vunpack.c.l.b16 %v1565
        %v1669 = vunpack.c.l.b16 %v1566
        %v1670 = vunpack.c.l.b16 %v1567
        %v1671 = vunpack.c.l.b16 %v1568
        %v1672 = vunpack.c.l.b16 %v1569
        %v1673 = vunpack.c.l.b16 %v1570
        %v1674 = vpack.c.b16 %v1627, %v1626
        %v1675 = vpack.c.b16 %v1629, %v1628
        %v1676 = vpack.c.b16 %v1631, %v1630
        %v1677 = vpack.c.b16 %v1633, %v1632
        %v1678 = vpack.c.b16 %v1635, %v1634
        %v1679 = vpack.c.b16 %v1637, %v1636
        %v1680 = vpack.c.b16 %v1639, %v1638
        %v1681 = vpack.c.b16 %v1641, %v1640
        %v1682 = vpack.c.b16 %v1643, %v1642
        %v1683 = vpack.c.b16 %v1645, %v1644
        %v1684 = vpack.c.b16 %v1647, %v1646
        %v1685 = vpack.c.b16 %v1649, %v1648
        %v1686 = vpack.c.b16 %v1651, %v1650
        %v1687 = vpack.c.b16 %v1653, %v1652
        %v1688 = vpack.c.b16 %v1655, %v1654
        %v1689 = vpack.c.b16 %v1657, %v1656
        %v1690 = vpack.c.b16 %v1659, %v1658
        %v1691 = vpack.c.b16 %v1661, %v1660
        %v1692 = vpack.c.b16 %v1663, %v1662
        %v1693 = vpack.c.b16 %v1665, %v1664
        %v1694 = vpack.c.b16 %v1667, %v1666
        %v1695 = vpack.c.b16 %v1669, %v1668
        %v1696 = vpack.c.b16 %v1671, %v1670
        %v1697 = vpack.c.b16 %v1673, %v1672
        %1722 = vmatprep.subr.bf16.mxu0 0
        %1723 = vmatpush1.bf16.msra.mxu0 %v1674
        %1724 = vmatprep.subr.bf16.mxu0 0
        %1725 = vmatpush1.bf16.msra.mxu0 %v1675
        %1726 = vmatprep.subr.bf16.mxu0 0
        %1727 = vmatpush1.bf16.msra.mxu0 %v1676
        %1728 = vmatprep.subr.bf16.mxu0 0
        %1729 = vmatpush1.bf16.msra.mxu0 %v1677
        %1730 = vmatprep.subr.bf16.mxu0 0
        %1731 = vmatpush1.bf16.msra.mxu0 %v1678
        %1732 = vmatprep.subr.bf16.mxu0 0
        %1733 = vmatpush1.bf16.msra.mxu0 %v1679
        %1734 = vmatprep.subr.bf16.mxu0 0
        %1735 = vmatpush1.bf16.msra.mxu0 %v1680
        %1736 = vmatprep.subr.bf16.mxu0 0
        %1737 = vmatpush1.bf16.msra.mxu0 %v1681
        %1738 = vmatprep.subr.bf16.mxu0 0
        %1739 = vmatpush1.bf16.msra.mxu0 %v1682
        %1740 = vmatprep.subr.bf16.mxu0 0
        %1741 = vmatpush1.bf16.msra.mxu0 %v1683
        %1742 = vmatprep.subr.bf16.mxu0 0
        %1743 = vmatpush1.bf16.msra.mxu0 %v1684
        %1744 = vmatprep.subr.bf16.mxu0 0
        %1745 = vmatpush1.bf16.msra.mxu0 %v1685
        %1746 = vmatprep.subr.bf16.mxu0 0
        %1747 = vmatpush1.bf16.msra.mxu0 %v1686
        %1748 = vmatprep.subr.bf16.mxu0 0
        %1749 = vmatpush1.bf16.msra.mxu0 %v1687
        %1750 = vmatprep.subr.bf16.mxu0 0
        %1751 = vmatpush1.bf16.msra.mxu0 %v1688
        %1752 = vmatprep.subr.bf16.mxu0 0
        %1753 = vmatpush1.bf16.msra.mxu0 %v1689
        %1754 = vmatprep.mubr.bf16.mxu0 %v1521
        %1755 = vmatmul.mubr.bf16.gmra.mrb[0].mxu0 %v1520
        %v1756 = vpop.f32.mrb[0].mxu0
        %v1757 = vadd.f32 %v1576, %v1756
        %v1758 = vpop.f32.mrb[0].mxu0
        %v1759 = vpop.f32.mrb[0].mxu0
        %v1760 = vpop.f32.mrb[0].mxu0
        %1761 = vdwg.mxu0
        %1762 = vmatprep.subr.bf16.mxu0 0
        %1763 = vmatpush1.bf16.msra.mxu0 %v1690
        %1764 = vmatprep.subr.bf16.mxu0 0
        %1765 = vmatpush1.bf16.msra.mxu0 %v1691
        %1766 = vmatprep.subr.bf16.mxu0 0
        %1767 = vmatpush1.bf16.msra.mxu0 %v1692
        %1768 = vmatprep.subr.bf16.mxu0 0
        %1769 = vmatpush1.bf16.msra.mxu0 %v1693
        %1770 = vmatprep.subr.bf16.mxu0 0
        %1771 = vmatpush1.bf16.msra.mxu0 %v1694
        %1772 = vmatprep.subr.bf16.mxu0 0
        %1773 = vmatpush1.bf16.msra.mxu0 %v1695
        %1774 = vmatprep.subr.bf16.mxu0 0
        %1775 = vmatpush1.bf16.msra.mxu0 %v1696
        %1776 = vmatprep.subr.bf16.mxu0 0
        %1777 = vmatpush1.bf16.msra.mxu0 %v1697
        %1778 = vmatprep.subr.bf16.mxu0 0
        %1779 = vmatpush1.bf16.msra.mxu0 0
        %1780 = vmatprep.subr.bf16.mxu0 0
        %1781 = vmatpush1.bf16.msra.mxu0 0
        %1782 = vmatprep.subr.bf16.mxu0 0
        %1783 = vmatpush1.bf16.msra.mxu0 0
        %1784 = vmatprep.subr.bf16.mxu0 0
        %1785 = vmatpush1.bf16.msra.mxu0 0
        %1786 = vmatprep.subr.bf16.mxu0 0
        %1787 = vmatpush1.bf16.msra.mxu0 0
        %1788 = vmatprep.subr.bf16.mxu0 0
        %1789 = vmatpush1.bf16.msra.mxu0 0
        %1790 = vmatprep.subr.bf16.mxu0 0
        %1791 = vmatpush1.bf16.msra.mxu0 0
        %1792 = vmatprep.subr.bf16.mxu0 0
        %1793 = vmatpush1.bf16.msra.mxu0 0
        %1794 = vmatprep.mubr.bf16.mxu0 0
        %1795 = vmatmul.mubr.bf16.gmra.mrb[0].mxu0 %v1522
        %v1796 = vpop.f32.mrb[0].mxu0
        %v1797 = vadd.f32 %v1757, %v1796
        %v1798 = vpop.f32.mrb[0].mxu0
        %v1799 = vpop.f32.mrb[0].mxu0
        %v1800 = vpop.f32.mrb[0].mxu0
        %1801 = vdwg.mxu0
        %1802 = vmax.xlane.f32.xlu0 %v1797
        %v1803 = vpop.xlane.xlu0 %1802
        %v1804 = vsub.f32 %v1797, %v1803
        %v1805 = vmul.f32 %v1804, 1.442695
        %v1806 = vpow.pop %v1805
        %1807 = vadd.xlane.f32.xlu0 %v1806
        %v1808 = vpop.xlane.xlu0 %1807
        %v1809 = vlog2.pop %v1808
        %v1810 = vmul.f32 %v1809, 0.6931472
        %v1811 = vsub.f32 %v1804, %v1810
        %v1812 = vpack.c.bf16 %v1811, %v1811
        %1813 = vst [vmem:[%s416] sm:$0xf] %v1812
        %s1814 = sand.u32 %s210, 1
        %s1815 = scalar_lea.sflag [#allocation4], %s1814
        %s1816 = sand.u32 %s210, 1
        %s1817 = smul.addr %s1816, 4
        %s1818 = scalar_lea.vmem [#allocation16], %s1817
        // Predicated region
        $region85: #{tpu_custom_call.1} parent=51 // pred_check
          %p1819 = pneg %p220
        $region86: #{tpu_custom_call.1} parent=51 // pred_check_branch
          %1821 = sbr.rel (%p1819) target = $region88
        $region87: #{tpu_custom_call.1} parent=51 // pred_region
          %s1823 = ssub.s32 64, 64
          %1824 = vsyncadd %s1815, %s1823
          %s1825 = smul.addr %s29, 64
          %s1826 = scalar_lea.hbm %s8, %s1825
          %s1828 = sshll.u32 %s1818, 4
          %s1829 = int_to_ptr.vmem [resolvable:$true] %s1828
          %1831 = dma.vmem_to_hbm [thread:$0]  %s1829, 64, %s1826, %s1815
        $region88: #{tpu_custom_call.1} parent=51 // pred_fallthru
          _
      $region52: #{tpu_custom_call.1} parent=5 // pred_fallthru
        _
      %p1832 = scmp.le.s32.totalorder 2, %s24
      // Predicated region
      $region89: #{tpu_custom_call.1} parent=5 // pred_check
        %p1833 = pneg %p1832
      $region90: #{tpu_custom_call.1} parent=5 // pred_check_branch
        %1835 = sbr.rel (%p1833) target = $region92
      $region91: #{tpu_custom_call.1} parent=5 // pred_region
        %s1836 = ssub.s32 %s24, 2
        // Predicated region
        $region93: #{tpu_custom_call.1} parent=91 // pred_check
          %p1837 = pneg %p226
        $region94: #{tpu_custom_call.1} parent=91 // pred_check_branch
          %1839 = sbr.rel (%p1837) target = $region96
        $region95: #{tpu_custom_call.1} parent=91 // pred_region
          %s1840 = sand.u32 %s211, 1
          %s1841 = scalar_lea.sflag [#allocation4], %s1840
          %s1842 = sand.u32 %s211, 1
          %s1843 = smul.addr %s1842, 4
          %s1844 = scalar_lea.vmem [#allocation16], %s1843
          %1845 = dma.done %s1841, 64
        $region96: #{tpu_custom_call.1} parent=91 // pred_fallthru
          _
      $region92: #{tpu_custom_call.1} parent=5 // pred_fallthru
        _
    $region6: #{tpu_custom_call.1} parent=1 // loop_footer
      %s28 = sadd.s32 1, %s24
    $region7: #{tpu_custom_call.1} parent=1 // loop_footer_branch
      %23 = sbr.rel target = $region3
    $region8: #{tpu_custom_call.1} parent=1 // loop_exit
      _
    %1846 = vsyncpa [#allocation3], 1
    %s1847 = scalar_lea.sflag [#allocation3], 1
    %1848 = vsyncpa %s1847, 1
    %1849 = vsyncpa [#allocation6], 1
    %1850 = vsyncpa [#allocation9], 1
    %1851 = vsyncpa [#allocation12], 1
    %1852 = vsyncpa [#allocation15], 1
    %1853 = vsyncpa [#allocation4], 1
    %s1854 = scalar_lea.sflag [#allocation4], 1
    %1855 = vsyncpa %s1854, 1

</llo_original>
